<compile_context>
chip_gen: v6e
topology: v6e:2x2x1
jax: 0.10.0
libtpu: 0.0.40
codegen_flags: <defaults>
</compile_context>

<pallas_src>
import jax
import jax.numpy as jnp
from jax import lax
from jax.experimental import pallas as pl
from jax.experimental.pallas import tpu as pltpu

# -----------------------------------------------------------------------------
# Small synthetic DeepseekV3 MoE config (consistent with DeepseekV3Config).
# -----------------------------------------------------------------------------
CFG = dict(
    hidden_size=256,
    moe_intermediate_size=128,
    n_shared_experts=2,
    n_routed_experts=8,
    num_experts_per_tok=2,
    norm_topk_prob=False,
    routed_scaling_factor=1.0,
)

HIDDEN = CFG["hidden_size"]
MOE_I = CFG["moe_intermediate_size"]
SHARED_I = MOE_I * CFG["n_shared_experts"]
E = CFG["n_routed_experts"]
TOPK = CFG["num_experts_per_tok"]

TM = 32                          # row tile of the grouped routed-expert matmul
VMEM_LIMIT = 48 * 1024 * 1024    # fits v7x's 64 MiB physical VMEM with headroom


# -----------------------------------------------------------------------------
# Shared helpers (used identically inside the kernels and in the reference).
# -----------------------------------------------------------------------------
def _silu_mul(gu, inter):
    g = gu[:, :inter]
    u = gu[:, inter:]
    return (g * (1.0 / (1.0 + jnp.exp(-g))) * u).astype(jnp.bfloat16)


def _grouping_dims(num_tokens):
    rows = num_tokens * TOPK
    r_max = rows + E * TM                      # worst-case per-group padding
    r_max = ((r_max + TM - 1) // TM) * TM
    return rows, r_max, r_max // TM


# -----------------------------------------------------------------------------
# Kernel 1: shared experts — dense SwiGLU MLP over large lane-dense token tiles.
# -----------------------------------------------------------------------------
def _shared_swiglu_kernel(x_ref, wgu_ref, wd_ref, o_ref):
    gu = jnp.dot(x_ref[...], wgu_ref[...], preferred_element_type=jnp.float32)
    h = _silu_mul(gu, SHARED_I)
    o_ref[...] = jnp.dot(h, wd_ref[...], preferred_element_type=jnp.float32)


def shared_experts_forward(x_bf, wgu, wd):
    num_tokens = x_bf.shape[0]
    tt = min(512, num_tokens)        # large token tiles amortize weight DMA
    assert num_tokens % tt == 0
    return pl.pallas_call(
        _shared_swiglu_kernel,
        out_shape=jax.ShapeDtypeStruct((num_tokens, HIDDEN), jnp.float32),
        grid=(num_tokens // tt,),
        in_specs=[pl.BlockSpec((tt, HIDDEN), lambda i: (i, 0)),
                  pl.BlockSpec((HIDDEN, 2 * SHARED_I), lambda i: (0, 0)),
                  pl.BlockSpec((SHARED_I, HIDDEN), lambda i: (0, 0))],
        out_specs=pl.BlockSpec((tt, HIDDEN), lambda i: (i, 0)),
        compiler_params=pltpu.CompilerParams(
            dimension_semantics=("parallel",), vmem_limit_bytes=VMEM_LIMIT),
    )(x_bf, wgu, wd)


# -----------------------------------------------------------------------------
# Kernel 2: routed experts — grouped (ragged) matmul over expert-sorted rows.
# Scalar-prefetched block->expert map drives data-dependent weight DMA.
# -----------------------------------------------------------------------------
def _routed_gmm_kernel(block_expert_ref, nblocks_ref, x_ref, wgu_ref, wd_ref,
                       y_ref):
    del block_expert_ref            # consumed by the BlockSpec index_maps
    b = pl.program_id(0)

    @pl.when(b < nblocks_ref[0])
    def _():
        gu = jnp.dot(x_ref[...], wgu_ref[0], preferred_element_type=jnp.float32)
        h = _silu_mul(gu, MOE_I)
        y_ref[...] = jnp.dot(h, wd_ref[0], preferred_element_type=jnp.float32)

    @pl.when(b >= nblocks_ref[0])
    def _():
        # Padded tail blocks: deterministic zeros (their rows are never gathered).
        y_ref[...] = jnp.zeros_like(y_ref)


def routed_experts_forward(x_grouped, block_expert, nblocks, wgu_e, wd_e):
    r_max = x_grouped.shape[0]
    num_blocks = r_max // TM
    return pl.pallas_call(
        _routed_gmm_kernel,
        out_shape=jax.ShapeDtypeStruct((r_max, HIDDEN), jnp.float32),
        grid_spec=pltpu.PrefetchScalarGridSpec(
            num_scalar_prefetch=2,
            grid=(num_blocks,),
            in_specs=[
                pl.BlockSpec((TM, HIDDEN), lambda b, be, nb: (b, 0)),
                # Data-dependent weight index: consecutive blocks of the same
                # expert return the same block -> weights DMA'd once per active
                # expert.  (pl.Buffered(3) is a further option at scale.)
                pl.BlockSpec((1, HIDDEN, 2 * MOE_I),
                             lambda b, be, nb: (be[b], 0, 0)),
                pl.BlockSpec((1, MOE_I, HIDDEN),
                             lambda b, be, nb: (be[b], 0, 0)),
            ],
            out_specs=pl.BlockSpec((TM, HIDDEN), lambda b, be, nb: (b, 0)),
        ),
        compiler_params=pltpu.CompilerParams(
            dimension_semantics=("parallel",), vmem_limit_bytes=VMEM_LIMIT),
    )(block_expert, nblocks, x_grouped, wgu_e, wd_e)


# -----------------------------------------------------------------------------
# Routing + token grouping glue (tiny [T, E] math; plain JAX by design).
# -----------------------------------------------------------------------------
def route_and_group(x, gate_w):
    num_tokens = x.shape[0]
    rows, r_max, num_blocks = _grouping_dims(num_tokens)

    logits = jnp.dot(x.astype(jnp.float32), gate_w)              # [T, E]
    scores = jax.nn.softmax(logits, axis=-1)                     # scoring_func='softmax'
    topk_w, topk_idx = lax.top_k(scores, TOPK)                   # [T, K]
    if CFG["norm_topk_prob"]:
        topk_w = topk_w / (jnp.sum(topk_w, axis=-1, keepdims=True) + 1e-20)
    topk_w = topk_w * CFG["routed_scaling_factor"]

    # Sort the T*K routed rows by expert.
    flat_e = topk_idx.reshape(-1).astype(jnp.int32)              # [T*K]
    order = jnp.argsort(flat_e)
    sorted_e = flat_e[order]
    sorted_tok = (order // TOPK).astype(jnp.int32)

    group_sizes = jnp.bincount(flat_e, length=E).astype(jnp.int32)   # [E]
    padded_sizes = ((group_sizes + TM - 1) // TM) * TM
    group_start = jnp.cumsum(group_sizes) - group_sizes               # exclusive
    padded_start = jnp.cumsum(padded_sizes) - padded_sizes

    # Destination row of each sorted routed row in the padded grouped layout.
    ar = jnp.arange(rows, dtype=jnp.int32)
    dest = padded_start[sorted_e] + (ar - group_start[sorted_e])

    x_grouped = jnp.zeros((r_max, HIDDEN), jnp.bfloat16)
    x_grouped = x_grouped.at[dest].set(x[sorted_tok].astype(jnp.bfloat16))
    # row_of[t, k]: grouped row holding token t's k-th routed-expert activation.
    row_of = jnp.zeros((rows,), jnp.int32).at[order].set(dest)
    row_of = row_of.reshape(num_tokens, TOPK)

    # Block -> expert map.  Empty experts own zero blocks (no weight DMA); the
    # padded tail blocks reuse the last active expert id (no extra DMA) and are
    # compute-skipped in the kernel via nb_active.
    nb_per_e = padded_sizes // TM
    nb_active = jnp.sum(nb_per_e).astype(jnp.int32)
    cum_blocks = jnp.cumsum(nb_per_e)
    bidx = jnp.arange(num_blocks, dtype=jnp.int32)
    block_expert = jnp.searchsorted(cum_blocks, bidx, side="right")
    block_expert = jnp.minimum(block_expert, E - 1).astype(jnp.int32)
    pad_e = jnp.max(jnp.where(group_sizes > 0,
                              jnp.arange(E, dtype=jnp.int32), 0)).astype(jnp.int32)
    block_expert = jnp.where(bidx < nb_active, block_expert, pad_e)

    return topk_w, row_of, x_grouped, block_expert, nb_active.reshape(1)


# -----------------------------------------------------------------------------
# DeepseekV3MoE.forward
# -----------------------------------------------------------------------------
def moe_forward(params, x):
    num_tokens = x.shape[0]
    x_bf = x.astype(jnp.bfloat16)

    # Shared experts: dense SwiGLU over all tokens (Pallas).
    shared = shared_experts_forward(x_bf, params["shared_gate_up"],
                                    params["shared_down"])

    # Router + token grouping (tiny glue math).
    topk_w, row_of, x_grouped, block_expert, nblocks = route_and_group(
        x, params["gate"])

    # Routed experts: grouped matmul over expert-sorted rows (Pallas).
    y_grouped = routed_experts_forward(x_grouped, block_expert, nblocks,
                                       params["expert_gate_up"],
                                       params["expert_down"])

    # Un-group: gather each token's top-k rows, apply routing weights, combine.
    y_tok = y_grouped[row_of.reshape(-1)].reshape(num_tokens, TOPK, HIDDEN)
    routed = jnp.sum(y_tok * topk_w[:, :, None], axis=1)
    return shared + routed                                       # [T, hidden]


# -----------------------------------------------------------------------------
# Pure-JAX reference of the same forward pass (for the correctness check).
# -----------------------------------------------------------------------------
def _swiglu_ref(x_bf, wgu, wd, inter):
    gu = jnp.dot(x_bf, wgu, preferred_element_type=jnp.float32)
    h = _silu_mul(gu, inter)
    return jnp.dot(h, wd, preferred_element_type=jnp.float32)


def moe_reference(params, x):
    x_bf = x.astype(jnp.bfloat16)
    shared = _swiglu_ref(x_bf, params["shared_gate_up"], params["shared_down"],
                         SHARED_I)

    logits = jnp.dot(x.astype(jnp.float32), params["gate"])
    scores = jax.nn.softmax(logits, axis=-1)
    topk_w, topk_idx = lax.top_k(scores, TOPK)
    if CFG["norm_topk_prob"]:
        topk_w = topk_w / (jnp.sum(topk_w, axis=-1, keepdims=True) + 1e-20)
    topk_w = topk_w * CFG["routed_scaling_factor"]
    per_expert_w = jnp.sum(
        jax.nn.one_hot(topk_idx, E, dtype=jnp.float32) * topk_w[:, :, None],
        axis=1)                                                   # [T, E]

    routed = jnp.zeros_like(shared)
    for e in range(E):
        ye = _swiglu_ref(x_bf, params["expert_gate_up"][e],
                         params["expert_down"][e], MOE_I)
        routed = routed + per_expert_w[:, e:e + 1] * ye
    return shared + routed


# -----------------------------------------------------------------------------
# Deterministic synthetic parameters.
# -----------------------------------------------------------------------------
def init_params(key):
    ks = jax.random.split(key, 5)

    def w(k, shape, fan_in):
        return jax.random.normal(k, shape, jnp.float32) / jnp.sqrt(float(fan_in))

    return dict(
        gate=w(ks[0], (HIDDEN, E), HIDDEN),
        shared_gate_up=w(ks[1], (HIDDEN, 2 * SHARED_I), HIDDEN).astype(jnp.bfloat16),
        shared_down=w(ks[2], (SHARED_I, HIDDEN), SHARED_I).astype(jnp.bfloat16),
        expert_gate_up=w(ks[3], (E, HIDDEN, 2 * MOE_I), HIDDEN).astype(jnp.bfloat16),
        expert_down=w(ks[4], (E, MOE_I, HIDDEN), MOE_I).astype(jnp.bfloat16),
    )


# -----------------------------------------------------------------------------
if __name__ == "__main__":
    params = init_params(jax.random.PRNGKey(0))

    T = 128   # flattened tokens; module returns out.view(*x.shape)
    x = jax.random.normal(jax.random.PRNGKey(1), (T, HIDDEN),
                          jnp.float32).astype(jnp.bfloat16)

    out = jax.block_until_ready(jax.jit(moe_forward)(params, x))
    ref = jax.block_until_ready(jax.jit(moe_reference)(params, x))

    assert out.shape == x.shape
    assert bool(jnp.all(jnp.isfinite(out)))
    max_err = float(jnp.max(jnp.abs(out - ref)))
    assert bool(jnp.allclose(out, ref, rtol=2e-2, atol=2e-2)), f"max err {max_err}"
    print("KERNEL_OK")
</pallas_src>

<mosaic_0001>
module attributes {stable_mosaic.version = 11 : i64} {
  func.func private @main(%arg0: i32) attributes {dimension_semantics = [#tpu.dimension_semantics<core_parallel>], iteration_bounds = array<i64: 2>, tpu.core_type = #tpu.core_type<sc_scalar_subcore>, window_params = []} {
    return
  }
}

module attributes {stable_mosaic.version = 11 : i64} {
  func.func private @main(%arg0: i32) attributes {dimension_semantics = [#tpu.dimension_semantics<core_parallel>], iteration_bounds = array<i64: 2>, tpu.core_type = #tpu.core_type<sc_scalar_subcore>, window_params = []} {
    return
  }
}

module attributes {stable_mosaic.version = 11 : i64} {
  func.func @_shared_swiglu_kernel(%arg0: i32, %arg1: memref<128x256xbf16, #tpu.memory_space<vmem>>, %arg2: memref<256x512xbf16, #tpu.memory_space<vmem>>, %arg3: memref<256x256xbf16, #tpu.memory_space<vmem>>, %arg4: memref<128x256xf32, #tpu.memory_space<vmem>>) attributes {dimension_semantics = [#tpu.dimension_semantics<parallel>], iteration_bounds = array<i64: 1>, scalar_prefetch = 0 : i64, scratch_operands = 0 : i64, tpu.core_type = #tpu.core_type<tc>, window_params = [{transform_indices = @transform_0, window_bounds = array<i64: 128, 256>}, {pipeline_mode = #tpu.pipeline_mode<synchronous>, transform_indices = @transform_1, window_bounds = array<i64: 256, 512>}, {pipeline_mode = #tpu.pipeline_mode<synchronous>, transform_indices = @transform_2, window_bounds = array<i64: 256, 256>}, {transform_indices = @transform_3, window_bounds = array<i64: 128, 256>}]} {
    %c0 = arith.constant 0 : index
    %c0_0 = arith.constant 0 : index
    %0 = vector.load %arg1[%c0, %c0_0] : memref<128x256xbf16, #tpu.memory_space<vmem>>, vector<128x256xbf16>
    %c0_1 = arith.constant 0 : index
    %c0_2 = arith.constant 0 : index
    %1 = vector.load %arg2[%c0_1, %c0_2] : memref<256x512xbf16, #tpu.memory_space<vmem>>, vector<256x512xbf16>
    %cst = arith.constant dense<0.000000e+00> : vector<128x512xf32>
    %2 = tpu.matmul %0, %1, %cst {dimension_numbers = #tpu.dot_dimension_numbers<[1], [0], [0], [1], [0, 0, 1, 1], [], []>} : vector<128x256xbf16>, vector<256x512xbf16>, vector<128x512xf32> -> vector<128x512xf32>
    %3 = vector.extract_strided_slice %2 {offsets = [0, 0], sizes = [128, 256], strides = [1, 1]} : vector<128x512xf32> to vector<128x256xf32>
    %4 = vector.extract_strided_slice %2 {offsets = [0, 256], sizes = [128, 256], strides = [1, 1]} : vector<128x512xf32> to vector<128x256xf32>
    %cst_3 = arith.constant 0.000000e+00 : f32
    %5 = vector.broadcast %cst_3 : f32 to vector<128x256xf32>
    %6 = arith.subf %5, %3 : vector<128x256xf32>
    %7 = math.exp %6 : vector<128x256xf32>
    %cst_4 = arith.constant 1.000000e+00 : f32
    %8 = vector.broadcast %cst_4 : f32 to vector<128x256xf32>
    %9 = arith.addf %8, %7 : vector<128x256xf32>
    %cst_5 = arith.constant 1.000000e+00 : f32
    %10 = vector.broadcast %cst_5 : f32 to vector<128x256xf32>
    %11 = arith.divf %10, %9 : vector<128x256xf32>
    %12 = arith.mulf %3, %11 : vector<128x256xf32>
    %13 = arith.mulf %12, %4 : vector<128x256xf32>
    %14 = arith.truncf %13 : vector<128x256xf32> to vector<128x256xbf16>
    %c0_6 = arith.constant 0 : index
    %c0_7 = arith.constant 0 : index
    %15 = vector.load %arg3[%c0_6, %c0_7] : memref<256x256xbf16, #tpu.memory_space<vmem>>, vector<256x256xbf16>
    %cst_8 = arith.constant dense<0.000000e+00> : vector<128x256xf32>
    %16 = tpu.matmul %14, %15, %cst_8 {dimension_numbers = #tpu.dot_dimension_numbers<[1], [0], [0], [1], [0, 0, 1, 1], [], []>} : vector<128x256xbf16>, vector<256x256xbf16>, vector<128x256xf32> -> vector<128x256xf32>
    %c0_9 = arith.constant 0 : index
    %c0_10 = arith.constant 0 : index
    %17 = vector.load %arg4[%c0_9, %c0_10] : memref<128x256xf32, #tpu.memory_space<vmem>>, vector<128x256xf32>
    tpu.vector_store %arg4[%c0_9, %c0_10], %16 {strides = array<i32>} : memref<128x256xf32, #tpu.memory_space<vmem>>, vector<128x256xf32>,
    return
  }
  func.func @transform_0(%arg0: i32) -> (i32, i32) {
    %c0_i32 = arith.constant 0 : i32
    %c0_i32_0 = arith.constant 0 : i32
    return %arg0, %c0_i32 : i32, i32
  }
  func.func @transform_1(%arg0: i32) -> (i32, i32) {
    %c0_i32 = arith.constant 0 : i32
    %c0_i32_0 = arith.constant 0 : i32
    %c0_i32_1 = arith.constant 0 : i32
    return %c0_i32, %c0_i32_0 : i32, i32
  }
  func.func @transform_2(%arg0: i32) -> (i32, i32) {
    %c0_i32 = arith.constant 0 : i32
    %c0_i32_0 = arith.constant 0 : i32
    %c0_i32_1 = arith.constant 0 : i32
    return %c0_i32, %c0_i32_0 : i32, i32
  }
  func.func @transform_3(%arg0: i32) -> (i32, i32) {
    %c0_i32 = arith.constant 0 : i32
    %c0_i32_0 = arith.constant 0 : i32
    return %arg0, %c0_i32 : i32, i32
  }
}

module attributes {stable_mosaic.version = 11 : i64} {
  func.func @_routed_gmm_kernel(%arg0: i32, %arg1: memref<16xi32, #tpu.memory_space<smem>>, %arg2: memref<1xi32, #tpu.memory_space<smem>>, %arg3: memref<32x256xbf16, #tpu.memory_space<vmem>>, %arg4: memref<1x256x256xbf16, #tpu.memory_space<vmem>>, %arg5: memref<1x128x256xbf16, #tpu.memory_space<vmem>>, %arg6: memref<32x256xf32, #tpu.memory_space<vmem>>) attributes {dimension_semantics = [#tpu.dimension_semantics<parallel>], iteration_bounds = array<i64: 16>, scalar_prefetch = 2 : i64, scratch_operands = 0 : i64, tpu.core_type = #tpu.core_type<tc>, window_params = [{transform_indices = @transform_0, window_bounds = array<i64: 32, 256>}, {transform_indices = @transform_1, window_bounds = array<i64: 1, 256, 256>}, {transform_indices = @transform_2, window_bounds = array<i64: 1, 128, 256>}, {transform_indices = @transform_3, window_bounds = array<i64: 32, 256>}]} {
    %c0 = arith.constant 0 : index
    %0 = memref.load %arg2[%c0] : memref<1xi32, #tpu.memory_space<smem>>
    %1 = arith.cmpi slt, %arg0, %0 : i32
    %2 = arith.extui %1 : i1 to i32
    %c0_i32 = arith.constant 0 : i32
    %3 = arith.cmpi ne, %2, %c0_i32 : i32
    scf.if %3 {
      %c0_2 = arith.constant 0 : index
      %c0_3 = arith.constant 0 : index
      %8 = vector.load %arg3[%c0_2, %c0_3] : memref<32x256xbf16, #tpu.memory_space<vmem>>, vector<32x256xbf16>
      %c0_4 = arith.constant 0 : index
      %c0_5 = arith.constant 0 : index
      %c0_6 = arith.constant 0 : index
      %9 = vector.load %arg4[%c0_4, %c0_5, %c0_6] : memref<1x256x256xbf16, #tpu.memory_space<vmem>>, vector<1x256x256xbf16>
      %10 = vector.shape_cast %9 : vector<1x256x256xbf16> to vector<256x256xbf16>
      %cst = arith.constant dense<0.000000e+00> : vector<32x256xf32>
      %11 = tpu.matmul %8, %10, %cst {dimension_numbers = #tpu.dot_dimension_numbers<[1], [0], [0], [1], [0, 0, 1, 1], [], []>} : vector<32x256xbf16>, vector<256x256xbf16>, vector<32x256xf32> -> vector<32x256xf32>
      %12 = vector.extract_strided_slice %11 {offsets = [0, 0], sizes = [32, 128], strides = [1, 1]} : vector<32x256xf32> to vector<32x128xf32>
      %13 = vector.extract_strided_slice %11 {offsets = [0, 128], sizes = [32, 128], strides = [1, 1]} : vector<32x256xf32> to vector<32x128xf32>
      %cst_7 = arith.constant 0.000000e+00 : f32
      %14 = vector.broadcast %cst_7 : f32 to vector<32x128xf32>
      %15 = arith.subf %14, %12 : vector<32x128xf32>
      %16 = math.exp %15 : vector<32x128xf32>
      %cst_8 = arith.constant 1.000000e+00 : f32
      %17 = vector.broadcast %cst_8 : f32 to vector<32x128xf32>
      %18 = arith.addf %17, %16 : vector<32x128xf32>
      %cst_9 = arith.constant 1.000000e+00 : f32
      %19 = vector.broadcast %cst_9 : f32 to vector<32x128xf32>
      %20 = arith.divf %19, %18 : vector<32x128xf32>
      %21 = arith.mulf %12, %20 : vector<32x128xf32>
      %22 = arith.mulf %21, %13 : vector<32x128xf32>
      %23 = arith.truncf %22 : vector<32x128xf32> to vector<32x128xbf16>
      %c0_10 = arith.constant 0 : index
      %c0_11 = arith.constant 0 : index
      %c0_12 = arith.constant 0 : index
      %24 = vector.load %arg5[%c0_10, %c0_11, %c0_12] : memref<1x128x256xbf16, #tpu.memory_space<vmem>>, vector<1x128x256xbf16>
      %25 = vector.shape_cast %24 : vector<1x128x256xbf16> to vector<128x256xbf16>
      %cst_13 = arith.constant dense<0.000000e+00> : vector<32x256xf32>
      %26 = tpu.matmul %23, %25, %cst_13 {dimension_numbers = #tpu.dot_dimension_numbers<[1], [0], [0], [1], [0, 0, 1, 1], [], []>} : vector<32x128xbf16>, vector<128x256xbf16>, vector<32x256xf32> -> vector<32x256xf32>
      %c0_14 = arith.constant 0 : index
      %c0_15 = arith.constant 0 : index
      %27 = vector.load %arg6[%c0_14, %c0_15] : memref<32x256xf32, #tpu.memory_space<vmem>>, vector<32x256xf32>
      tpu.vector_store %arg6[%c0_14, %c0_15], %26 {strides = array<i32>} : memref<32x256xf32, #tpu.memory_space<vmem>>, vector<32x256xf32>,
    } else {
    }
    %c0_0 = arith.constant 0 : index
    %4 = memref.load %arg2[%c0_0] : memref<1xi32, #tpu.memory_space<smem>>
    %5 = arith.cmpi sge, %arg0, %4 : i32
    %6 = arith.extui %5 : i1 to i32
    %c0_i32_1 = arith.constant 0 : i32
    %7 = arith.cmpi ne, %6, %c0_i32_1 : i32
    scf.if %7 {
      %cst = arith.constant 0.000000e+00 : f32
      %8 = vector.broadcast %cst : f32 to vector<32x256xf32>
      %c0_2 = arith.constant 0 : index
      %c0_3 = arith.constant 0 : index
      %9 = vector.load %arg6[%c0_2, %c0_3] : memref<32x256xf32, #tpu.memory_space<vmem>>, vector<32x256xf32>
      tpu.vector_store %arg6[%c0_2, %c0_3], %8 {strides = array<i32>} : memref<32x256xf32, #tpu.memory_space<vmem>>, vector<32x256xf32>,
    } else {
    }
    return
  }
  func.func @transform_0(%arg0: i32, %arg1: memref<16xi32, #tpu.memory_space<smem>>, %arg2: memref<1xi32, #tpu.memory_space<smem>>) -> (i32, i32) {
    %c0_i32 = arith.constant 0 : i32
    %c0_i32_0 = arith.constant 0 : i32
    return %arg0, %c0_i32 : i32, i32
  }
  func.func @transform_1(%arg0: i32, %arg1: memref<16xi32, #tpu.memory_space<smem>>, %arg2: memref<1xi32, #tpu.memory_space<smem>>) -> (i32, i32, i32) {
    %0 = arith.index_cast %arg0 : i32 to index
    %1 = memref.load %arg1[%0] : memref<16xi32, #tpu.memory_space<smem>>
    %c0_i32 = arith.constant 0 : i32
    %c0_i32_0 = arith.constant 0 : i32
    %c0_i32_1 = arith.constant 0 : i32
    return %1, %c0_i32, %c0_i32_0 : i32, i32, i32
  }
  func.func @transform_2(%arg0: i32, %arg1: memref<16xi32, #tpu.memory_space<smem>>, %arg2: memref<1xi32, #tpu.memory_space<smem>>) -> (i32, i32, i32) {
    %0 = arith.index_cast %arg0 : i32 to index
    %1 = memref.load %arg1[%0] : memref<16xi32, #tpu.memory_space<smem>>
    %c0_i32 = arith.constant 0 : i32
    %c0_i32_0 = arith.constant 0 : i32
    %c0_i32_1 = arith.constant 0 : i32
    return %1, %c0_i32, %c0_i32_0 : i32, i32, i32
  }
  func.func @transform_3(%arg0: i32, %arg1: memref<16xi32, #tpu.memory_space<smem>>, %arg2: memref<1xi32, #tpu.memory_space<smem>>) -> (i32, i32) {
    %c0_i32 = arith.constant 0 : i32
    %c0_i32_0 = arith.constant 0 : i32
    return %arg0, %c0_i32 : i32, i32
  }
}

</mosaic_0001>

<llo_original>
// kernel: custom-call
$region0: #{custom-call}
  %s0 = inlined_call_operand.vmem [shape: u32[16], index: 0, kind: output, shape index: {}]

// kernel: moe_forward.2
$region0: #{moe_forward.2}
  #allocation0 [shape = 'u32[]', space=smem, size = 0x4, offset = 0x4, fixed_abs, tag = 'smem constant byte address 0x4 - core index']
  #allocation1 [shape = 'u32[144,128]{1,0:T(1,128)}', space=vmem, size = 0x12000, scoped, tag = 'internal scratch']
  %s0 = inlined_call_operand.vmem [shape: bf16[128,256], index: 0, kind: input, shape index: {}]
  %s1 = inlined_call_operand.vmem [shape: bf16[256,512], index: 1, kind: input, shape index: {}]
  %s2 = inlined_call_operand.vmem [shape: bf16[256,256], index: 2, kind: input, shape index: {}]
  %s3 = inlined_call_operand.vmem [shape: f32[128,256], index: 3, kind: output, shape index: {}]
  %s4 = sld [smem:[#allocation0]]
  $region22: #{moe_forward.2} parent=0
    _
  %s6 = ssub.s32 1, %s4
  %s7 = scalar_select 0, %s6, %s4
  // Predicated region
  $region2: #{moe_forward.2} parent=0 // pred_check
    _
  $region3: #{moe_forward.2} parent=0 // pred_check_branch
    %9 = sbr.rel (0) target = $region5
  $region4: #{moe_forward.2} parent=0 // pred_region
    _
  $region5: #{moe_forward.2} parent=0 // pred_fallthru
    _
  // Predicated region
  $region6: #{moe_forward.2} parent=0 // pred_check
    _
  $region7: #{moe_forward.2} parent=0 // pred_check_branch
    %11 = sbr.rel (0) target = $region9
  $region8: #{moe_forward.2} parent=0 // pred_region
    _
  $region9: #{moe_forward.2} parent=0 // pred_fallthru
    _
  // Predicated region
  $region10: #{moe_forward.2} parent=0 // pred_check
    _
  $region11: #{moe_forward.2} parent=0 // pred_check_branch
    %13 = sbr.rel (0) target = $region13
  $region12: #{moe_forward.2} parent=0 // pred_region
    _
  $region13: #{moe_forward.2} parent=0 // pred_fallthru
    _
  %v14 = vld [vmem:[%s0] sm:$0xff]
  %v15 = vld [vmem:[%s0 + $0x8] sm:$0xff]
  %v16 = vld [vmem:[%s0 + $0x10] sm:$0xff]
  %v17 = vld [vmem:[%s0 + $0x18] sm:$0xff]
  %v18 = vld [vmem:[%s0 + $0x20] sm:$0xff]
  %v19 = vld [vmem:[%s0 + $0x28] sm:$0xff]
  %v20 = vld [vmem:[%s0 + $0x30] sm:$0xff]
  %v21 = vld [vmem:[%s0 + $0x38] sm:$0xff]
  %v22 = vld [vmem:[%s0 + $0x40] sm:$0xff]
  %v23 = vld [vmem:[%s0 + $0x48] sm:$0xff]
  %v24 = vld [vmem:[%s0 + $0x50] sm:$0xff]
  %v25 = vld [vmem:[%s0 + $0x58] sm:$0xff]
  %v26 = vld [vmem:[%s0 + $0x60] sm:$0xff]
  %v27 = vld [vmem:[%s0 + $0x68] sm:$0xff]
  %v28 = vld [vmem:[%s0 + $0x70] sm:$0xff]
  %v29 = vld [vmem:[%s0 + $0x78] sm:$0xff]
  %v30 = vld [vmem:[%s1] sm:$0xff]
  %v31 = vld [vmem:[%s1 + $0x8] sm:$0xff]
  %v32 = vld [vmem:[%s1 + $0x10] sm:$0xff]
  %v33 = vld [vmem:[%s1 + $0x18] sm:$0xff]
  %v34 = vld [vmem:[%s1 + $0x20] sm:$0xff]
  %v35 = vld [vmem:[%s1 + $0x28] sm:$0xff]
  %v36 = vld [vmem:[%s1 + $0x30] sm:$0xff]
  %v37 = vld [vmem:[%s1 + $0x38] sm:$0xff]
  %v38 = vld [vmem:[%s1 + $0x40] sm:$0xff]
  %v39 = vld [vmem:[%s1 + $0x48] sm:$0xff]
  %v40 = vld [vmem:[%s1 + $0x50] sm:$0xff]
  %v41 = vld [vmem:[%s1 + $0x58] sm:$0xff]
  %v42 = vld [vmem:[%s1 + $0x60] sm:$0xff]
  %v43 = vld [vmem:[%s1 + $0x68] sm:$0xff]
  %v44 = vld [vmem:[%s1 + $0x70] sm:$0xff]
  %v45 = vld [vmem:[%s1 + $0x78] sm:$0xff]
  %v46 = vld [vmem:[%s1 + $0x80] sm:$0xff]
  %v47 = vld [vmem:[%s1 + $0x88] sm:$0xff]
  %v48 = vld [vmem:[%s1 + $0x90] sm:$0xff]
  %v49 = vld [vmem:[%s1 + $0x98] sm:$0xff]
  %v50 = vld [vmem:[%s1 + $0xa0] sm:$0xff]
  %v51 = vld [vmem:[%s1 + $0xa8] sm:$0xff]
  %v52 = vld [vmem:[%s1 + $0xb0] sm:$0xff]
  %v53 = vld [vmem:[%s1 + $0xb8] sm:$0xff]
  %v54 = vld [vmem:[%s1 + $0xc0] sm:$0xff]
  %v55 = vld [vmem:[%s1 + $0xc8] sm:$0xff]
  %v56 = vld [vmem:[%s1 + $0xd0] sm:$0xff]
  %v57 = vld [vmem:[%s1 + $0xd8] sm:$0xff]
  %v58 = vld [vmem:[%s1 + $0xe0] sm:$0xff]
  %v59 = vld [vmem:[%s1 + $0xe8] sm:$0xff]
  %v60 = vld [vmem:[%s1 + $0xf0] sm:$0xff]
  %v61 = vld [vmem:[%s1 + $0xf8] sm:$0xff]
  %v62 = vld [vmem:[%s1 + $0x100] sm:$0xff]
  %v63 = vld [vmem:[%s1 + $0x108] sm:$0xff]
  %v64 = vld [vmem:[%s1 + $0x110] sm:$0xff]
  %v65 = vld [vmem:[%s1 + $0x118] sm:$0xff]
  %v66 = vld [vmem:[%s1 + $0x120] sm:$0xff]
  %v67 = vld [vmem:[%s1 + $0x128] sm:$0xff]
  %v68 = vld [vmem:[%s1 + $0x130] sm:$0xff]
  %v69 = vld [vmem:[%s1 + $0x138] sm:$0xff]
  %v70 = vld [vmem:[%s1 + $0x140] sm:$0xff]
  %v71 = vld [vmem:[%s1 + $0x148] sm:$0xff]
  %v72 = vld [vmem:[%s1 + $0x150] sm:$0xff]
  %v73 = vld [vmem:[%s1 + $0x158] sm:$0xff]
  %v74 = vld [vmem:[%s1 + $0x160] sm:$0xff]
  %v75 = vld [vmem:[%s1 + $0x168] sm:$0xff]
  %v76 = vld [vmem:[%s1 + $0x170] sm:$0xff]
  %v77 = vld [vmem:[%s1 + $0x178] sm:$0xff]
  %v78 = vld [vmem:[%s1 + $0x180] sm:$0xff]
  %v79 = vld [vmem:[%s1 + $0x188] sm:$0xff]
  %v80 = vld [vmem:[%s1 + $0x190] sm:$0xff]
  %v81 = vld [vmem:[%s1 + $0x198] sm:$0xff]
  %v82 = vld [vmem:[%s1 + $0x1a0] sm:$0xff]
  %v83 = vld [vmem:[%s1 + $0x1a8] sm:$0xff]
  %v84 = vld [vmem:[%s1 + $0x1b0] sm:$0xff]
  %v85 = vld [vmem:[%s1 + $0x1b8] sm:$0xff]
  %v86 = vld [vmem:[%s1 + $0x1c0] sm:$0xff]
  %v87 = vld [vmem:[%s1 + $0x1c8] sm:$0xff]
  %v88 = vld [vmem:[%s1 + $0x1d0] sm:$0xff]
  %v89 = vld [vmem:[%s1 + $0x1d8] sm:$0xff]
  %v90 = vld [vmem:[%s1 + $0x1e0] sm:$0xff]
  %v91 = vld [vmem:[%s1 + $0x1e8] sm:$0xff]
  %v92 = vld [vmem:[%s1 + $0x1f0] sm:$0xff]
  %v93 = vld [vmem:[%s1 + $0x1f8] sm:$0xff]
  %v110 = vunpack.c.l.b16 %v14
  %v111 = vunpack.c.h.b16 %v14
  %v112 = vunpack.c.l.b16 %v15
  %v113 = vunpack.c.h.b16 %v15
  %v114 = vunpack.c.l.b16 %v16
  %v115 = vunpack.c.h.b16 %v16
  %v116 = vunpack.c.l.b16 %v17
  %v117 = vunpack.c.h.b16 %v17
  %v118 = vunpack.c.l.b16 %v18
  %v119 = vunpack.c.h.b16 %v18
  %v120 = vunpack.c.l.b16 %v19
  %v121 = vunpack.c.h.b16 %v19
  %v122 = vunpack.c.l.b16 %v20
  %v123 = vunpack.c.h.b16 %v20
  %v124 = vunpack.c.l.b16 %v21
  %v125 = vunpack.c.h.b16 %v21
  %v126 = vunpack.c.l.b16 %v22
  %v127 = vunpack.c.h.b16 %v22
  %v128 = vunpack.c.l.b16 %v23
  %v129 = vunpack.c.h.b16 %v23
  %v130 = vunpack.c.l.b16 %v24
  %v131 = vunpack.c.h.b16 %v24
  %v132 = vunpack.c.l.b16 %v25
  %v133 = vunpack.c.h.b16 %v25
  %v134 = vunpack.c.l.b16 %v26
  %v135 = vunpack.c.h.b16 %v26
  %v136 = vunpack.c.l.b16 %v27
  %v137 = vunpack.c.h.b16 %v27
  %v138 = vunpack.c.l.b16 %v28
  %v139 = vunpack.c.h.b16 %v28
  %v140 = vunpack.c.l.b16 %v29
  %v141 = vunpack.c.h.b16 %v29
  %v142 = vpack.c.b16 %v112, %v110
  %v143 = vpack.c.b16 %v113, %v111
  %v144 = vpack.c.b16 %v116, %v114
  %v145 = vpack.c.b16 %v117, %v115
  %v146 = vpack.c.b16 %v120, %v118
  %v147 = vpack.c.b16 %v121, %v119
  %v148 = vpack.c.b16 %v124, %v122
  %v149 = vpack.c.b16 %v125, %v123
  %v150 = vpack.c.b16 %v128, %v126
  %v151 = vpack.c.b16 %v129, %v127
  %v152 = vpack.c.b16 %v132, %v130
  %v153 = vpack.c.b16 %v133, %v131
  %v154 = vpack.c.b16 %v136, %v134
  %v155 = vpack.c.b16 %v137, %v135
  %v156 = vpack.c.b16 %v140, %v138
  %v157 = vpack.c.b16 %v141, %v139
  %v238 = vunpack.c.l.b16 %v30
  %v239 = vunpack.c.h.b16 %v30
  %v240 = vunpack.c.l.b16 %v31
  %v241 = vunpack.c.h.b16 %v31
  %v242 = vunpack.c.l.b16 %v32
  %v243 = vunpack.c.h.b16 %v32
  %v244 = vunpack.c.l.b16 %v33
  %v245 = vunpack.c.h.b16 %v33
  %v246 = vunpack.c.l.b16 %v34
  %v247 = vunpack.c.h.b16 %v34
  %v248 = vunpack.c.l.b16 %v35
  %v249 = vunpack.c.h.b16 %v35
  %v250 = vunpack.c.l.b16 %v36
  %v251 = vunpack.c.h.b16 %v36
  %v252 = vunpack.c.l.b16 %v37
  %v253 = vunpack.c.h.b16 %v37
  %v254 = vunpack.c.l.b16 %v38
  %v255 = vunpack.c.h.b16 %v38
  %v256 = vunpack.c.l.b16 %v39
  %v257 = vunpack.c.h.b16 %v39
  %v258 = vunpack.c.l.b16 %v40
  %v259 = vunpack.c.h.b16 %v40
  %v260 = vunpack.c.l.b16 %v41
  %v261 = vunpack.c.h.b16 %v41
  %v262 = vunpack.c.l.b16 %v42
  %v263 = vunpack.c.h.b16 %v42
  %v264 = vunpack.c.l.b16 %v43
  %v265 = vunpack.c.h.b16 %v43
  %v266 = vunpack.c.l.b16 %v44
  %v267 = vunpack.c.h.b16 %v44
  %v268 = vunpack.c.l.b16 %v45
  %v269 = vunpack.c.h.b16 %v45
  %v270 = vunpack.c.l.b16 %v46
  %v271 = vunpack.c.h.b16 %v46
  %v272 = vunpack.c.l.b16 %v47
  %v273 = vunpack.c.h.b16 %v47
  %v274 = vunpack.c.l.b16 %v48
  %v275 = vunpack.c.h.b16 %v48
  %v276 = vunpack.c.l.b16 %v49
  %v277 = vunpack.c.h.b16 %v49
  %v278 = vunpack.c.l.b16 %v50
  %v279 = vunpack.c.h.b16 %v50
  %v280 = vunpack.c.l.b16 %v51
  %v281 = vunpack.c.h.b16 %v51
  %v282 = vunpack.c.l.b16 %v52
  %v283 = vunpack.c.h.b16 %v52
  %v284 = vunpack.c.l.b16 %v53
  %v285 = vunpack.c.h.b16 %v53
  %v286 = vunpack.c.l.b16 %v54
  %v287 = vunpack.c.h.b16 %v54
  %v288 = vunpack.c.l.b16 %v55
  %v289 = vunpack.c.h.b16 %v55
  %v290 = vunpack.c.l.b16 %v56
  %v291 = vunpack.c.h.b16 %v56
  %v292 = vunpack.c.l.b16 %v57
  %v293 = vunpack.c.h.b16 %v57
  %v294 = vunpack.c.l.b16 %v58
  %v295 = vunpack.c.h.b16 %v58
  %v296 = vunpack.c.l.b16 %v59
  %v297 = vunpack.c.h.b16 %v59
  %v298 = vunpack.c.l.b16 %v60
  %v299 = vunpack.c.h.b16 %v60
  %v300 = vunpack.c.l.b16 %v61
  %v301 = vunpack.c.h.b16 %v61
  %v302 = vunpack.c.l.b16 %v62
  %v303 = vunpack.c.h.b16 %v62
  %v304 = vunpack.c.l.b16 %v63
  %v305 = vunpack.c.h.b16 %v63
  %v306 = vunpack.c.l.b16 %v64
  %v307 = vunpack.c.h.b16 %v64
  %v308 = vunpack.c.l.b16 %v65
  %v309 = vunpack.c.h.b16 %v65
  %v310 = vunpack.c.l.b16 %v66
  %v311 = vunpack.c.h.b16 %v66
  %v312 = vunpack.c.l.b16 %v67
  %v313 = vunpack.c.h.b16 %v67
  %v314 = vunpack.c.l.b16 %v68
  %v315 = vunpack.c.h.b16 %v68
  %v316 = vunpack.c.l.b16 %v69
  %v317 = vunpack.c.h.b16 %v69
  %v318 = vunpack.c.l.b16 %v70
  %v319 = vunpack.c.h.b16 %v70
  %v320 = vunpack.c.l.b16 %v71
  %v321 = vunpack.c.h.b16 %v71
  %v322 = vunpack.c.l.b16 %v72
  %v323 = vunpack.c.h.b16 %v72
  %v324 = vunpack.c.l.b16 %v73
  %v325 = vunpack.c.h.b16 %v73
  %v326 = vunpack.c.l.b16 %v74
  %v327 = vunpack.c.h.b16 %v74
  %v328 = vunpack.c.l.b16 %v75
  %v329 = vunpack.c.h.b16 %v75
  %v330 = vunpack.c.l.b16 %v76
  %v331 = vunpack.c.h.b16 %v76
  %v332 = vunpack.c.l.b16 %v77
  %v333 = vunpack.c.h.b16 %v77
  %v334 = vunpack.c.l.b16 %v78
  %v335 = vunpack.c.h.b16 %v78
  %v336 = vunpack.c.l.b16 %v79
  %v337 = vunpack.c.h.b16 %v79
  %v338 = vunpack.c.l.b16 %v80
  %v339 = vunpack.c.h.b16 %v80
  %v340 = vunpack.c.l.b16 %v81
  %v341 = vunpack.c.h.b16 %v81
  %v342 = vunpack.c.l.b16 %v82
  %v343 = vunpack.c.h.b16 %v82
  %v344 = vunpack.c.l.b16 %v83
  %v345 = vunpack.c.h.b16 %v83
  %v346 = vunpack.c.l.b16 %v84
  %v347 = vunpack.c.h.b16 %v84
  %v348 = vunpack.c.l.b16 %v85
  %v349 = vunpack.c.h.b16 %v85
  %v350 = vunpack.c.l.b16 %v86
  %v351 = vunpack.c.h.b16 %v86
  %v352 = vunpack.c.l.b16 %v87
  %v353 = vunpack.c.h.b16 %v87
  %v354 = vunpack.c.l.b16 %v88
  %v355 = vunpack.c.h.b16 %v88
  %v356 = vunpack.c.l.b16 %v89
  %v357 = vunpack.c.h.b16 %v89
  %v358 = vunpack.c.l.b16 %v90
  %v359 = vunpack.c.h.b16 %v90
  %v360 = vunpack.c.l.b16 %v91
  %v361 = vunpack.c.h.b16 %v91
  %v362 = vunpack.c.l.b16 %v92
  %v363 = vunpack.c.h.b16 %v92
  %v364 = vunpack.c.l.b16 %v93
  %v365 = vunpack.c.h.b16 %v93
  %v366 = vpack.c.b16 %v242, %v238
  %v367 = vpack.c.b16 %v243, %v239
  %v368 = vpack.c.b16 %v244, %v240
  %v369 = vpack.c.b16 %v245, %v241
  %v370 = vpack.c.b16 %v250, %v246
  %v371 = vpack.c.b16 %v251, %v247
  %v372 = vpack.c.b16 %v252, %v248
  %v373 = vpack.c.b16 %v253, %v249
  %v374 = vpack.c.b16 %v258, %v254
  %v375 = vpack.c.b16 %v259, %v255
  %v376 = vpack.c.b16 %v260, %v256
  %v377 = vpack.c.b16 %v261, %v257
  %v378 = vpack.c.b16 %v266, %v262
  %v379 = vpack.c.b16 %v267, %v263
  %v380 = vpack.c.b16 %v268, %v264
  %v381 = vpack.c.b16 %v269, %v265
  %v382 = vpack.c.b16 %v274, %v270
  %v383 = vpack.c.b16 %v275, %v271
  %v384 = vpack.c.b16 %v276, %v272
  %v385 = vpack.c.b16 %v277, %v273
  %v386 = vpack.c.b16 %v282, %v278
  %v387 = vpack.c.b16 %v283, %v279
  %v388 = vpack.c.b16 %v284, %v280
  %v389 = vpack.c.b16 %v285, %v281
  %v390 = vpack.c.b16 %v290, %v286
  %v391 = vpack.c.b16 %v291, %v287
  %v392 = vpack.c.b16 %v292, %v288
  %v393 = vpack.c.b16 %v293, %v289
  %v394 = vpack.c.b16 %v298, %v294
  %v395 = vpack.c.b16 %v299, %v295
  %v396 = vpack.c.b16 %v300, %v296
  %v397 = vpack.c.b16 %v301, %v297
  %v398 = vpack.c.b16 %v306, %v302
  %v399 = vpack.c.b16 %v307, %v303
  %v400 = vpack.c.b16 %v308, %v304
  %v401 = vpack.c.b16 %v309, %v305
  %v402 = vpack.c.b16 %v314, %v310
  %v403 = vpack.c.b16 %v315, %v311
  %v404 = vpack.c.b16 %v316, %v312
  %v405 = vpack.c.b16 %v317, %v313
  %v406 = vpack.c.b16 %v322, %v318
  %v407 = vpack.c.b16 %v323, %v319
  %v408 = vpack.c.b16 %v324, %v320
  %v409 = vpack.c.b16 %v325, %v321
  %v410 = vpack.c.b16 %v330, %v326
  %v411 = vpack.c.b16 %v331, %v327
  %v412 = vpack.c.b16 %v332, %v328
  %v413 = vpack.c.b16 %v333, %v329
  %v414 = vpack.c.b16 %v338, %v334
  %v415 = vpack.c.b16 %v339, %v335
  %v416 = vpack.c.b16 %v340, %v336
  %v417 = vpack.c.b16 %v341, %v337
  %v418 = vpack.c.b16 %v346, %v342
  %v419 = vpack.c.b16 %v347, %v343
  %v420 = vpack.c.b16 %v348, %v344
  %v421 = vpack.c.b16 %v349, %v345
  %v422 = vpack.c.b16 %v354, %v350
  %v423 = vpack.c.b16 %v355, %v351
  %v424 = vpack.c.b16 %v356, %v352
  %v425 = vpack.c.b16 %v357, %v353
  %v426 = vpack.c.b16 %v362, %v358
  %v427 = vpack.c.b16 %v363, %v359
  %v428 = vpack.c.b16 %v364, %v360
  %v429 = vpack.c.b16 %v365, %v361
  %494 = vmatprep.subr.bf16.mxu0 %v395
  %495 = vmatpush1.bf16.msra.mxu0 %v394
  %496 = vmatprep.subr.bf16.mxu0 %v391
  %497 = vmatpush1.bf16.msra.mxu0 %v390
  %498 = vmatprep.subr.bf16.mxu0 %v387
  %499 = vmatpush1.bf16.msra.mxu0 %v386
  %500 = vmatprep.subr.bf16.mxu0 %v383
  %501 = vmatpush1.bf16.msra.mxu0 %v382
  %502 = vmatprep.subr.bf16.mxu0 %v379
  %503 = vmatpush1.bf16.msra.mxu0 %v378
  %504 = vmatprep.subr.bf16.mxu0 %v375
  %505 = vmatpush1.bf16.msra.mxu0 %v374
  %506 = vmatprep.subr.bf16.mxu0 %v371
  %507 = vmatpush1.bf16.msra.mxu0 %v370
  %508 = vmatprep.subr.bf16.mxu0 %v367
  %509 = vmatpush1.bf16.msra.mxu0 %v366
  %510 = vmatprep.subr.bf16.mxu0 %v427
  %511 = vmatpush2.bf16.msra.mxu0 %v426
  %512 = vmatprep.subr.bf16.mxu0 %v423
  %513 = vmatpush2.bf16.msra.mxu0 %v422
  %514 = vmatprep.subr.bf16.mxu0 %v419
  %515 = vmatpush2.bf16.msra.mxu0 %v418
  %516 = vmatprep.subr.bf16.mxu0 %v415
  %517 = vmatpush2.bf16.msra.mxu0 %v414
  %518 = vmatprep.subr.bf16.mxu0 %v411
  %519 = vmatpush2.bf16.msra.mxu0 %v410
  %520 = vmatprep.subr.bf16.mxu0 %v407
  %521 = vmatpush2.bf16.msra.mxu0 %v406
  %522 = vmatprep.subr.bf16.mxu0 %v403
  %523 = vmatpush2.bf16.msra.mxu0 %v402
  %524 = vmatprep.subr.bf16.mxu0 %v399
  %525 = vmatpush2.bf16.msra.mxu0 %v398
  %526 = vmatprep.mubr.bf16.mxu0 %v143
  %527 = vmatmul.mubr.bf16.gmra.mxu0 %v142
  %v528 = vpop.f32.mrf.mxu0
  %v529 = vadd.f32 0.0, %v528
  %v530 = vpop.f32.mrf.mxu0
  %v531 = vadd.f32 0.0, %v530
  %v532 = vpop.f32.mrf.mxu0
  %v533 = vadd.f32 0.0, %v532
  %v534 = vpop.f32.mrf.mxu0
  %v535 = vadd.f32 0.0, %v534
  %536 = vmatprep.mubr.bf16.mxu0 %v145
  %537 = vmatmul.mubr.bf16.gmra.mxu0 %v144
  %v538 = vpop.f32.mrf.mxu0
  %v539 = vadd.f32 0.0, %v538
  %v540 = vpop.f32.mrf.mxu0
  %v541 = vadd.f32 0.0, %v540
  %v542 = vpop.f32.mrf.mxu0
  %v543 = vadd.f32 0.0, %v542
  %v544 = vpop.f32.mrf.mxu0
  %v545 = vadd.f32 0.0, %v544
  %546 = vmatprep.mubr.bf16.mxu0 %v147
  %547 = vmatmul.mubr.bf16.gmra.mxu0 %v146
  %v548 = vpop.f32.mrf.mxu0
  %v549 = vadd.f32 0.0, %v548
  %v550 = vpop.f32.mrf.mxu0
  %v551 = vadd.f32 0.0, %v550
  %v552 = vpop.f32.mrf.mxu0
  %v553 = vadd.f32 0.0, %v552
  %v554 = vpop.f32.mrf.mxu0
  %v555 = vadd.f32 0.0, %v554
  %556 = vmatprep.mubr.bf16.mxu0 %v149
  %557 = vmatmul.mubr.bf16.gmra.mxu0 %v148
  %v558 = vpop.f32.mrf.mxu0
  %v559 = vadd.f32 0.0, %v558
  %v560 = vpop.f32.mrf.mxu0
  %v561 = vadd.f32 0.0, %v560
  %v562 = vpop.f32.mrf.mxu0
  %v563 = vadd.f32 0.0, %v562
  %v564 = vpop.f32.mrf.mxu0
  %v565 = vadd.f32 0.0, %v564
  %566 = vmatprep.mubr.bf16.mxu0 %v151
  %567 = vmatmul.mubr.bf16.gmra.mxu0 %v150
  %v568 = vpop.f32.mrf.mxu0
  %v569 = vadd.f32 0.0, %v568
  %v570 = vpop.f32.mrf.mxu0
  %v571 = vadd.f32 0.0, %v570
  %v572 = vpop.f32.mrf.mxu0
  %v573 = vadd.f32 0.0, %v572
  %v574 = vpop.f32.mrf.mxu0
  %v575 = vadd.f32 0.0, %v574
  %576 = vmatprep.mubr.bf16.mxu0 %v153
  %577 = vmatmul.mubr.bf16.gmra.mxu0 %v152
  %v578 = vpop.f32.mrf.mxu0
  %v579 = vadd.f32 0.0, %v578
  %v580 = vpop.f32.mrf.mxu0
  %v581 = vadd.f32 0.0, %v580
  %v582 = vpop.f32.mrf.mxu0
  %v583 = vadd.f32 0.0, %v582
  %v584 = vpop.f32.mrf.mxu0
  %v585 = vadd.f32 0.0, %v584
  %586 = vmatprep.mubr.bf16.mxu0 %v155
  %587 = vmatmul.mubr.bf16.gmra.mxu0 %v154
  %v588 = vpop.f32.mrf.mxu0
  %v589 = vadd.f32 0.0, %v588
  %v590 = vpop.f32.mrf.mxu0
  %v591 = vadd.f32 0.0, %v590
  %v592 = vpop.f32.mrf.mxu0
  %v593 = vadd.f32 0.0, %v592
  %v594 = vpop.f32.mrf.mxu0
  %v595 = vadd.f32 0.0, %v594
  %596 = vmatprep.mubr.bf16.mxu0 %v157
  %597 = vmatmul.mubr.bf16.gmra.mxu0 %v156
  %v598 = vpop.f32.mrf.mxu0
  %v599 = vadd.f32 0.0, %v598
  %v600 = vpop.f32.mrf.mxu0
  %v601 = vadd.f32 0.0, %v600
  %v602 = vpop.f32.mrf.mxu0
  %v603 = vadd.f32 0.0, %v602
  %v604 = vpop.f32.mrf.mxu0
  %v605 = vadd.f32 0.0, %v604
  %606 = vdwg.mxu0
  %607 = vmatprep.subr.bf16.mxu0 %v397
  %608 = vmatpush1.bf16.msra.mxu0 %v396
  %609 = vmatprep.subr.bf16.mxu0 %v393
  %610 = vmatpush1.bf16.msra.mxu0 %v392
  %611 = vmatprep.subr.bf16.mxu0 %v389
  %612 = vmatpush1.bf16.msra.mxu0 %v388
  %613 = vmatprep.subr.bf16.mxu0 %v385
  %614 = vmatpush1.bf16.msra.mxu0 %v384
  %615 = vmatprep.subr.bf16.mxu0 %v381
  %616 = vmatpush1.bf16.msra.mxu0 %v380
  %617 = vmatprep.subr.bf16.mxu0 %v377
  %618 = vmatpush1.bf16.msra.mxu0 %v376
  %619 = vmatprep.subr.bf16.mxu0 %v373
  %620 = vmatpush1.bf16.msra.mxu0 %v372
  %621 = vmatprep.subr.bf16.mxu0 %v369
  %622 = vmatpush1.bf16.msra.mxu0 %v368
  %623 = vmatprep.subr.bf16.mxu0 %v429
  %624 = vmatpush2.bf16.msra.mxu0 %v428
  %625 = vmatprep.subr.bf16.mxu0 %v425
  %626 = vmatpush2.bf16.msra.mxu0 %v424
  %627 = vmatprep.subr.bf16.mxu0 %v421
  %628 = vmatpush2.bf16.msra.mxu0 %v420
  %629 = vmatprep.subr.bf16.mxu0 %v417
  %630 = vmatpush2.bf16.msra.mxu0 %v416
  %631 = vmatprep.subr.bf16.mxu0 %v413
  %632 = vmatpush2.bf16.msra.mxu0 %v412
  %633 = vmatprep.subr.bf16.mxu0 %v409
  %634 = vmatpush2.bf16.msra.mxu0 %v408
  %635 = vmatprep.subr.bf16.mxu0 %v405
  %636 = vmatpush2.bf16.msra.mxu0 %v404
  %637 = vmatprep.subr.bf16.mxu0 %v401
  %638 = vmatpush2.bf16.msra.mxu0 %v400
  %639 = vmatprep.mubr.bf16.mxu0 %v143
  %640 = vmatmul.mubr.bf16.gmra.mxu0 %v142
  %v641 = vpop.f32.mrf.mxu0
  %v642 = vadd.f32 0.0, %v641
  %v643 = vpop.f32.mrf.mxu0
  %v644 = vadd.f32 0.0, %v643
  %v645 = vpop.f32.mrf.mxu0
  %v646 = vadd.f32 0.0, %v645
  %v647 = vpop.f32.mrf.mxu0
  %v648 = vadd.f32 0.0, %v647
  %649 = vmatprep.mubr.bf16.mxu0 %v145
  %650 = vmatmul.mubr.bf16.gmra.mxu0 %v144
  %v651 = vpop.f32.mrf.mxu0
  %v652 = vadd.f32 0.0, %v651
  %v653 = vpop.f32.mrf.mxu0
  %v654 = vadd.f32 0.0, %v653
  %v655 = vpop.f32.mrf.mxu0
  %v656 = vadd.f32 0.0, %v655
  %v657 = vpop.f32.mrf.mxu0
  %v658 = vadd.f32 0.0, %v657
  %659 = vmatprep.mubr.bf16.mxu0 %v147
  %660 = vmatmul.mubr.bf16.gmra.mxu0 %v146
  %v661 = vpop.f32.mrf.mxu0
  %v662 = vadd.f32 0.0, %v661
  %v663 = vpop.f32.mrf.mxu0
  %v664 = vadd.f32 0.0, %v663
  %v665 = vpop.f32.mrf.mxu0
  %v666 = vadd.f32 0.0, %v665
  %v667 = vpop.f32.mrf.mxu0
  %v668 = vadd.f32 0.0, %v667
  %669 = vmatprep.mubr.bf16.mxu0 %v149
  %670 = vmatmul.mubr.bf16.gmra.mxu0 %v148
  %v671 = vpop.f32.mrf.mxu0
  %v672 = vadd.f32 0.0, %v671
  %v673 = vpop.f32.mrf.mxu0
  %v674 = vadd.f32 0.0, %v673
  %v675 = vpop.f32.mrf.mxu0
  %v676 = vadd.f32 0.0, %v675
  %v677 = vpop.f32.mrf.mxu0
  %v678 = vadd.f32 0.0, %v677
  %679 = vmatprep.mubr.bf16.mxu0 %v151
  %680 = vmatmul.mubr.bf16.gmra.mxu0 %v150
  %v681 = vpop.f32.mrf.mxu0
  %v682 = vadd.f32 0.0, %v681
  %v683 = vpop.f32.mrf.mxu0
  %v684 = vadd.f32 0.0, %v683
  %v685 = vpop.f32.mrf.mxu0
  %v686 = vadd.f32 0.0, %v685
  %v687 = vpop.f32.mrf.mxu0
  %v688 = vadd.f32 0.0, %v687
  %689 = vmatprep.mubr.bf16.mxu0 %v153
  %690 = vmatmul.mubr.bf16.gmra.mxu0 %v152
  %v691 = vpop.f32.mrf.mxu0
  %v692 = vadd.f32 0.0, %v691
  %v693 = vpop.f32.mrf.mxu0
  %v694 = vadd.f32 0.0, %v693
  %v695 = vpop.f32.mrf.mxu0
  %v696 = vadd.f32 0.0, %v695
  %v697 = vpop.f32.mrf.mxu0
  %v698 = vadd.f32 0.0, %v697
  %699 = vmatprep.mubr.bf16.mxu0 %v155
  %700 = vmatmul.mubr.bf16.gmra.mxu0 %v154
  %v701 = vpop.f32.mrf.mxu0
  %v702 = vadd.f32 0.0, %v701
  %v703 = vpop.f32.mrf.mxu0
  %v704 = vadd.f32 0.0, %v703
  %v705 = vpop.f32.mrf.mxu0
  %v706 = vadd.f32 0.0, %v705
  %v707 = vpop.f32.mrf.mxu0
  %v708 = vadd.f32 0.0, %v707
  %709 = vmatprep.mubr.bf16.mxu0 %v157
  %710 = vmatmul.mubr.bf16.gmra.mxu0 %v156
  %v711 = vpop.f32.mrf.mxu0
  %v712 = vadd.f32 0.0, %v711
  %v713 = vpop.f32.mrf.mxu0
  %v714 = vadd.f32 0.0, %v713
  %v715 = vpop.f32.mrf.mxu0
  %v716 = vadd.f32 0.0, %v715
  %v717 = vpop.f32.mrf.mxu0
  %v718 = vadd.f32 0.0, %v717
  %719 = vdwg.mxu0
  %v720 = vsub.f32 0.0, %v529
  %v721 = vsub.f32 0.0, %v531
  %v722 = vsub.f32 0.0, %v533
  %v723 = vsub.f32 0.0, %v535
  %v724 = vsub.f32 0.0, %v539
  %v725 = vsub.f32 0.0, %v541
  %v726 = vsub.f32 0.0, %v543
  %v727 = vsub.f32 0.0, %v545
  %v728 = vsub.f32 0.0, %v549
  %v729 = vsub.f32 0.0, %v551
  %v730 = vsub.f32 0.0, %v553
  %v731 = vsub.f32 0.0, %v555
  %v732 = vsub.f32 0.0, %v559
  %v733 = vsub.f32 0.0, %v561
  %v734 = vsub.f32 0.0, %v563
  %v735 = vsub.f32 0.0, %v565
  %v736 = vsub.f32 0.0, %v569
  %v737 = vsub.f32 0.0, %v571
  %v738 = vsub.f32 0.0, %v573
  %v739 = vsub.f32 0.0, %v575
  %v740 = vsub.f32 0.0, %v579
  %v741 = vsub.f32 0.0, %v581
  %v742 = vsub.f32 0.0, %v583
  %v743 = vsub.f32 0.0, %v585
  %v744 = vsub.f32 0.0, %v589
  %v745 = vsub.f32 0.0, %v591
  %v746 = vsub.f32 0.0, %v593
  %v747 = vsub.f32 0.0, %v595
  %v748 = vsub.f32 0.0, %v599
  %v749 = vsub.f32 0.0, %v601
  %v750 = vsub.f32 0.0, %v603
  %v751 = vsub.f32 0.0, %v605
  %v752 = vmul.f32 %v720, 1.442695
  %v753 = vpow.pop %v752
  %v754 = vmul.f32 %v721, 1.442695
  %v755 = vpow.pop %v754
  %v756 = vmul.f32 %v722, 1.442695
  %v757 = vpow.pop %v756
  %v758 = vmul.f32 %v723, 1.442695
  %v759 = vpow.pop %v758
  %v760 = vmul.f32 %v724, 1.442695
  %v761 = vpow.pop %v760
  %v762 = vmul.f32 %v725, 1.442695
  %v763 = vpow.pop %v762
  %v764 = vmul.f32 %v726, 1.442695
  %v765 = vpow.pop %v764
  %v766 = vmul.f32 %v727, 1.442695
  %v767 = vpow.pop %v766
  %v768 = vmul.f32 %v728, 1.442695
  %v769 = vpow.pop %v768
  %v770 = vmul.f32 %v729, 1.442695
  %v771 = vpow.pop %v770
  %v772 = vmul.f32 %v730, 1.442695
  %v773 = vpow.pop %v772
  %v774 = vmul.f32 %v731, 1.442695
  %v775 = vpow.pop %v774
  %v776 = vmul.f32 %v732, 1.442695
  %v777 = vpow.pop %v776
  %v778 = vmul.f32 %v733, 1.442695
  %v779 = vpow.pop %v778
  %v780 = vmul.f32 %v734, 1.442695
  %v781 = vpow.pop %v780
  %v782 = vmul.f32 %v735, 1.442695
  %v783 = vpow.pop %v782
  %v784 = vmul.f32 %v736, 1.442695
  %v785 = vpow.pop %v784
  %v786 = vmul.f32 %v737, 1.442695
  %v787 = vpow.pop %v786
  %v788 = vmul.f32 %v738, 1.442695
  %v789 = vpow.pop %v788
  %v790 = vmul.f32 %v739, 1.442695
  %v791 = vpow.pop %v790
  %v792 = vmul.f32 %v740, 1.442695
  %v793 = vpow.pop %v792
  %v794 = vmul.f32 %v741, 1.442695
  %v795 = vpow.pop %v794
  %v796 = vmul.f32 %v742, 1.442695
  %v797 = vpow.pop %v796
  %v798 = vmul.f32 %v743, 1.442695
  %v799 = vpow.pop %v798
  %v800 = vmul.f32 %v744, 1.442695
  %v801 = vpow.pop %v800
  %v802 = vmul.f32 %v745, 1.442695
  %v803 = vpow.pop %v802
  %v804 = vmul.f32 %v746, 1.442695
  %v805 = vpow.pop %v804
  %v806 = vmul.f32 %v747, 1.442695
  %v807 = vpow.pop %v806
  %v808 = vmul.f32 %v748, 1.442695
  %v809 = vpow.pop %v808
  %v810 = vmul.f32 %v749, 1.442695
  %v811 = vpow.pop %v810
  %v812 = vmul.f32 %v750, 1.442695
  %v813 = vpow.pop %v812
  %v814 = vmul.f32 %v751, 1.442695
  %v815 = vpow.pop %v814
  %v816 = vadd.f32 %v753, 1.0
  %v817 = vadd.f32 %v755, 1.0
  %v818 = vadd.f32 %v757, 1.0
  %v819 = vadd.f32 %v759, 1.0
  %v820 = vadd.f32 %v761, 1.0
  %v821 = vadd.f32 %v763, 1.0
  %v822 = vadd.f32 %v765, 1.0
  %v823 = vadd.f32 %v767, 1.0
  %v824 = vadd.f32 %v769, 1.0
  %v825 = vadd.f32 %v771, 1.0
  %v826 = vadd.f32 %v773, 1.0
  %v827 = vadd.f32 %v775, 1.0
  %v828 = vadd.f32 %v777, 1.0
  %v829 = vadd.f32 %v779, 1.0
  %v830 = vadd.f32 %v781, 1.0
  %v831 = vadd.f32 %v783, 1.0
  %v832 = vadd.f32 %v785, 1.0
  %v833 = vadd.f32 %v787, 1.0
  %v834 = vadd.f32 %v789, 1.0
  %v835 = vadd.f32 %v791, 1.0
  %v836 = vadd.f32 %v793, 1.0
  %v837 = vadd.f32 %v795, 1.0
  %v838 = vadd.f32 %v797, 1.0
  %v839 = vadd.f32 %v799, 1.0
  %v840 = vadd.f32 %v801, 1.0
  %v841 = vadd.f32 %v803, 1.0
  %v842 = vadd.f32 %v805, 1.0
  %v843 = vadd.f32 %v807, 1.0
  %v844 = vadd.f32 %v809, 1.0
  %v845 = vadd.f32 %v811, 1.0
  %v846 = vadd.f32 %v813, 1.0
  %v847 = vadd.f32 %v815, 1.0
  %v848 = vrcp.pop %v816
  %v849 = vmul.f32 1.0, %v848
  %v850 = vrcp.pop %v817
  %v851 = vmul.f32 1.0, %v850
  %v852 = vrcp.pop %v818
  %v853 = vmul.f32 1.0, %v852
  %v854 = vrcp.pop %v819
  %v855 = vmul.f32 1.0, %v854
  %v856 = vrcp.pop %v820
  %v857 = vmul.f32 1.0, %v856
  %v858 = vrcp.pop %v821
  %v859 = vmul.f32 1.0, %v858
  %v860 = vrcp.pop %v822
  %v861 = vmul.f32 1.0, %v860
  %v862 = vrcp.pop %v823
  %v863 = vmul.f32 1.0, %v862
  %v864 = vrcp.pop %v824
  %v865 = vmul.f32 1.0, %v864
  %v866 = vrcp.pop %v825
  %v867 = vmul.f32 1.0, %v866
  %v868 = vrcp.pop %v826
  %v869 = vmul.f32 1.0, %v868
  %v870 = vrcp.pop %v827
  %v871 = vmul.f32 1.0, %v870
  %v872 = vrcp.pop %v828
  %v873 = vmul.f32 1.0, %v872
  %v874 = vrcp.pop %v829
  %v875 = vmul.f32 1.0, %v874
  %v876 = vrcp.pop %v830
  %v877 = vmul.f32 1.0, %v876
  %v878 = vrcp.pop %v831
  %v879 = vmul.f32 1.0, %v878
  %v880 = vrcp.pop %v832
  %v881 = vmul.f32 1.0, %v880
  %v882 = vrcp.pop %v833
  %v883 = vmul.f32 1.0, %v882
  %v884 = vrcp.pop %v834
  %v885 = vmul.f32 1.0, %v884
  %v886 = vrcp.pop %v835
  %v887 = vmul.f32 1.0, %v886
  %v888 = vrcp.pop %v836
  %v889 = vmul.f32 1.0, %v888
  %v890 = vrcp.pop %v837
  %v891 = vmul.f32 1.0, %v890
  %v892 = vrcp.pop %v838
  %v893 = vmul.f32 1.0, %v892
  %v894 = vrcp.pop %v839
  %v895 = vmul.f32 1.0, %v894
  %v896 = vrcp.pop %v840
  %v897 = vmul.f32 1.0, %v896
  %v898 = vrcp.pop %v841
  %v899 = vmul.f32 1.0, %v898
  %v900 = vrcp.pop %v842
  %v901 = vmul.f32 1.0, %v900
  %v902 = vrcp.pop %v843
  %v903 = vmul.f32 1.0, %v902
  %v904 = vrcp.pop %v844
  %v905 = vmul.f32 1.0, %v904
  %v906 = vrcp.pop %v845
  %v907 = vmul.f32 1.0, %v906
  %v908 = vrcp.pop %v846
  %v909 = vmul.f32 1.0, %v908
  %v910 = vrcp.pop %v847
  %v911 = vmul.f32 1.0, %v910
  %v912 = vmul.f32 %v529, %v849
  %v913 = vmul.f32 %v531, %v851
  %v914 = vmul.f32 %v533, %v853
  %v915 = vmul.f32 %v535, %v855
  %v916 = vmul.f32 %v539, %v857
  %v917 = vmul.f32 %v541, %v859
  %v918 = vmul.f32 %v543, %v861
  %v919 = vmul.f32 %v545, %v863
  %v920 = vmul.f32 %v549, %v865
  %v921 = vmul.f32 %v551, %v867
  %v922 = vmul.f32 %v553, %v869
  %v923 = vmul.f32 %v555, %v871
  %v924 = vmul.f32 %v559, %v873
  %v925 = vmul.f32 %v561, %v875
  %v926 = vmul.f32 %v563, %v877
  %v927 = vmul.f32 %v565, %v879
  %v928 = vmul.f32 %v569, %v881
  %v929 = vmul.f32 %v571, %v883
  %v930 = vmul.f32 %v573, %v885
  %v931 = vmul.f32 %v575, %v887
  %v932 = vmul.f32 %v579, %v889
  %v933 = vmul.f32 %v581, %v891
  %v934 = vmul.f32 %v583, %v893
  %v935 = vmul.f32 %v585, %v895
  %v936 = vmul.f32 %v589, %v897
  %v937 = vmul.f32 %v591, %v899
  %v938 = vmul.f32 %v593, %v901
  %v939 = vmul.f32 %v595, %v903
  %v940 = vmul.f32 %v599, %v905
  %v941 = vmul.f32 %v601, %v907
  %v942 = vmul.f32 %v603, %v909
  %v943 = vmul.f32 %v605, %v911
  %v944 = vmul.f32 %v912, %v642
  %v945 = vmul.f32 %v913, %v644
  %v946 = vmul.f32 %v914, %v646
  %v947 = vmul.f32 %v915, %v648
  %v948 = vmul.f32 %v916, %v652
  %v949 = vmul.f32 %v917, %v654
  %v950 = vmul.f32 %v918, %v656
  %v951 = vmul.f32 %v919, %v658
  %v952 = vmul.f32 %v920, %v662
  %v953 = vmul.f32 %v921, %v664
  %v954 = vmul.f32 %v922, %v666
  %v955 = vmul.f32 %v923, %v668
  %v956 = vmul.f32 %v924, %v672
  %v957 = vmul.f32 %v925, %v674
  %v958 = vmul.f32 %v926, %v676
  %v959 = vmul.f32 %v927, %v678
  %v960 = vmul.f32 %v928, %v682
  %v961 = vmul.f32 %v929, %v684
  %v962 = vmul.f32 %v930, %v686
  %v963 = vmul.f32 %v931, %v688
  %v964 = vmul.f32 %v932, %v692
  %v965 = vmul.f32 %v933, %v694
  %v966 = vmul.f32 %v934, %v696
  %v967 = vmul.f32 %v935, %v698
  %v968 = vmul.f32 %v936, %v702
  %v969 = vmul.f32 %v937, %v704
  %v970 = vmul.f32 %v938, %v706
  %v971 = vmul.f32 %v939, %v708
  %v972 = vmul.f32 %v940, %v712
  %v973 = vmul.f32 %v941, %v714
  %v974 = vmul.f32 %v942, %v716
  %v975 = vmul.f32 %v943, %v718
  %v976 = vpack.c.bf16 %v946, %v944
  %v977 = vpack.c.bf16 %v947, %v945
  %v978 = vpack.c.bf16 %v950, %v948
  %v979 = vpack.c.bf16 %v951, %v949
  %v980 = vpack.c.bf16 %v954, %v952
  %v981 = vpack.c.bf16 %v955, %v953
  %v982 = vpack.c.bf16 %v958, %v956
  %v983 = vpack.c.bf16 %v959, %v957
  %v984 = vpack.c.bf16 %v962, %v960
  %v985 = vpack.c.bf16 %v963, %v961
  %v986 = vpack.c.bf16 %v966, %v964
  %v987 = vpack.c.bf16 %v967, %v965
  %v988 = vpack.c.bf16 %v970, %v968
  %v989 = vpack.c.bf16 %v971, %v969
  %v990 = vpack.c.bf16 %v974, %v972
  %v991 = vpack.c.bf16 %v975, %v973
  %v992 = vld [vmem:[%s2] sm:$0xff]
  %v993 = vld [vmem:[%s2 + $0x8] sm:$0xff]
  %v994 = vld [vmem:[%s2 + $0x10] sm:$0xff]
  %v995 = vld [vmem:[%s2 + $0x18] sm:$0xff]
  %v996 = vld [vmem:[%s2 + $0x20] sm:$0xff]
  %v997 = vld [vmem:[%s2 + $0x28] sm:$0xff]
  %v998 = vld [vmem:[%s2 + $0x30] sm:$0xff]
  %v999 = vld [vmem:[%s2 + $0x38] sm:$0xff]
  %v1000 = vld [vmem:[%s2 + $0x40] sm:$0xff]
  %v1001 = vld [vmem:[%s2 + $0x48] sm:$0xff]
  %v1002 = vld [vmem:[%s2 + $0x50] sm:$0xff]
  %v1003 = vld [vmem:[%s2 + $0x58] sm:$0xff]
  %v1004 = vld [vmem:[%s2 + $0x60] sm:$0xff]
  %v1005 = vld [vmem:[%s2 + $0x68] sm:$0xff]
  %v1006 = vld [vmem:[%s2 + $0x70] sm:$0xff]
  %v1007 = vld [vmem:[%s2 + $0x78] sm:$0xff]
  %v1008 = vld [vmem:[%s2 + $0x80] sm:$0xff]
  %v1009 = vld [vmem:[%s2 + $0x88] sm:$0xff]
  %v1010 = vld [vmem:[%s2 + $0x90] sm:$0xff]
  %v1011 = vld [vmem:[%s2 + $0x98] sm:$0xff]
  %v1012 = vld [vmem:[%s2 + $0xa0] sm:$0xff]
  %v1013 = vld [vmem:[%s2 + $0xa8] sm:$0xff]
  %v1014 = vld [vmem:[%s2 + $0xb0] sm:$0xff]
  %v1015 = vld [vmem:[%s2 + $0xb8] sm:$0xff]
  %v1016 = vld [vmem:[%s2 + $0xc0] sm:$0xff]
  %v1017 = vld [vmem:[%s2 + $0xc8] sm:$0xff]
  %v1018 = vld [vmem:[%s2 + $0xd0] sm:$0xff]
  %v1019 = vld [vmem:[%s2 + $0xd8] sm:$0xff]
  %v1020 = vld [vmem:[%s2 + $0xe0] sm:$0xff]
  %v1021 = vld [vmem:[%s2 + $0xe8] sm:$0xff]
  %v1022 = vld [vmem:[%s2 + $0xf0] sm:$0xff]
  %v1023 = vld [vmem:[%s2 + $0xf8] sm:$0xff]
  %v1056 = vunpack.c.l.b16 %v992
  %v1057 = vunpack.c.h.b16 %v992
  %v1058 = vunpack.c.l.b16 %v993
  %v1059 = vunpack.c.h.b16 %v993
  %v1060 = vunpack.c.l.b16 %v994
  %v1061 = vunpack.c.h.b16 %v994
  %v1062 = vunpack.c.l.b16 %v995
  %v1063 = vunpack.c.h.b16 %v995
  %v1064 = vunpack.c.l.b16 %v996
  %v1065 = vunpack.c.h.b16 %v996
  %v1066 = vunpack.c.l.b16 %v997
  %v1067 = vunpack.c.h.b16 %v997
  %v1068 = vunpack.c.l.b16 %v998
  %v1069 = vunpack.c.h.b16 %v998
  %v1070 = vunpack.c.l.b16 %v999
  %v1071 = vunpack.c.h.b16 %v999
  %v1072 = vunpack.c.l.b16 %v1000
  %v1073 = vunpack.c.h.b16 %v1000
  %v1074 = vunpack.c.l.b16 %v1001
  %v1075 = vunpack.c.h.b16 %v1001
  %v1076 = vunpack.c.l.b16 %v1002
  %v1077 = vunpack.c.h.b16 %v1002
  %v1078 = vunpack.c.l.b16 %v1003
  %v1079 = vunpack.c.h.b16 %v1003
  %v1080 = vunpack.c.l.b16 %v1004
  %v1081 = vunpack.c.h.b16 %v1004
  %v1082 = vunpack.c.l.b16 %v1005
  %v1083 = vunpack.c.h.b16 %v1005
  %v1084 = vunpack.c.l.b16 %v1006
  %v1085 = vunpack.c.h.b16 %v1006
  %v1086 = vunpack.c.l.b16 %v1007
  %v1087 = vunpack.c.h.b16 %v1007
  %v1088 = vunpack.c.l.b16 %v1008
  %v1089 = vunpack.c.h.b16 %v1008
  %v1090 = vunpack.c.l.b16 %v1009
  %v1091 = vunpack.c.h.b16 %v1009
  %v1092 = vunpack.c.l.b16 %v1010
  %v1093 = vunpack.c.h.b16 %v1010
  %v1094 = vunpack.c.l.b16 %v1011
  %v1095 = vunpack.c.h.b16 %v1011
  %v1096 = vunpack.c.l.b16 %v1012
  %v1097 = vunpack.c.h.b16 %v1012
  %v1098 = vunpack.c.l.b16 %v1013
  %v1099 = vunpack.c.h.b16 %v1013
  %v1100 = vunpack.c.l.b16 %v1014
  %v1101 = vunpack.c.h.b16 %v1014
  %v1102 = vunpack.c.l.b16 %v1015
  %v1103 = vunpack.c.h.b16 %v1015
  %v1104 = vunpack.c.l.b16 %v1016
  %v1105 = vunpack.c.h.b16 %v1016
  %v1106 = vunpack.c.l.b16 %v1017
  %v1107 = vunpack.c.h.b16 %v1017
  %v1108 = vunpack.c.l.b16 %v1018
  %v1109 = vunpack.c.h.b16 %v1018
  %v1110 = vunpack.c.l.b16 %v1019
  %v1111 = vunpack.c.h.b16 %v1019
  %v1112 = vunpack.c.l.b16 %v1020
  %v1113 = vunpack.c.h.b16 %v1020
  %v1114 = vunpack.c.l.b16 %v1021
  %v1115 = vunpack.c.h.b16 %v1021
  %v1116 = vunpack.c.l.b16 %v1022
  %v1117 = vunpack.c.h.b16 %v1022
  %v1118 = vunpack.c.l.b16 %v1023
  %v1119 = vunpack.c.h.b16 %v1023
  %v1120 = vpack.c.b16 %v1058, %v1056
  %v1121 = vpack.c.b16 %v1059, %v1057
  %v1122 = vpack.c.b16 %v1062, %v1060
  %v1123 = vpack.c.b16 %v1063, %v1061
  %v1124 = vpack.c.b16 %v1066, %v1064
  %v1125 = vpack.c.b16 %v1067, %v1065
  %v1126 = vpack.c.b16 %v1070, %v1068
  %v1127 = vpack.c.b16 %v1071, %v1069
  %v1128 = vpack.c.b16 %v1074, %v1072
  %v1129 = vpack.c.b16 %v1075, %v1073
  %v1130 = vpack.c.b16 %v1078, %v1076
  %v1131 = vpack.c.b16 %v1079, %v1077
  %v1132 = vpack.c.b16 %v1082, %v1080
  %v1133 = vpack.c.b16 %v1083, %v1081
  %v1134 = vpack.c.b16 %v1086, %v1084
  %v1135 = vpack.c.b16 %v1087, %v1085
  %v1136 = vpack.c.b16 %v1090, %v1088
  %v1137 = vpack.c.b16 %v1091, %v1089
  %v1138 = vpack.c.b16 %v1094, %v1092
  %v1139 = vpack.c.b16 %v1095, %v1093
  %v1140 = vpack.c.b16 %v1098, %v1096
  %v1141 = vpack.c.b16 %v1099, %v1097
  %v1142 = vpack.c.b16 %v1102, %v1100
  %v1143 = vpack.c.b16 %v1103, %v1101
  %v1144 = vpack.c.b16 %v1106, %v1104
  %v1145 = vpack.c.b16 %v1107, %v1105
  %v1146 = vpack.c.b16 %v1110, %v1108
  %v1147 = vpack.c.b16 %v1111, %v1109
  %v1148 = vpack.c.b16 %v1114, %v1112
  %v1149 = vpack.c.b16 %v1115, %v1113
  %v1150 = vpack.c.b16 %v1118, %v1116
  %v1151 = vpack.c.b16 %v1119, %v1117
  %1184 = vmatprep.subr.bf16.mxu0 %v1135
  %1185 = vmatpush1.bf16.msra.mxu0 %v1134
  %1186 = vmatprep.subr.bf16.mxu0 %v1133
  %1187 = vmatpush1.bf16.msra.mxu0 %v1132
  %1188 = vmatprep.subr.bf16.mxu0 %v1131
  %1189 = vmatpush1.bf16.msra.mxu0 %v1130
  %1190 = vmatprep.subr.bf16.mxu0 %v1129
  %1191 = vmatpush1.bf16.msra.mxu0 %v1128
  %1192 = vmatprep.subr.bf16.mxu0 %v1127
  %1193 = vmatpush1.bf16.msra.mxu0 %v1126
  %1194 = vmatprep.subr.bf16.mxu0 %v1125
  %1195 = vmatpush1.bf16.msra.mxu0 %v1124
  %1196 = vmatprep.subr.bf16.mxu0 %v1123
  %1197 = vmatpush1.bf16.msra.mxu0 %v1122
  %1198 = vmatprep.subr.bf16.mxu0 %v1121
  %1199 = vmatpush1.bf16.msra.mxu0 %v1120
  %1200 = vmatprep.subr.bf16.mxu0 %v1151
  %1201 = vmatpush2.bf16.msra.mxu0 %v1150
  %1202 = vmatprep.subr.bf16.mxu0 %v1149
  %1203 = vmatpush2.bf16.msra.mxu0 %v1148
  %1204 = vmatprep.subr.bf16.mxu0 %v1147
  %1205 = vmatpush2.bf16.msra.mxu0 %v1146
  %1206 = vmatprep.subr.bf16.mxu0 %v1145
  %1207 = vmatpush2.bf16.msra.mxu0 %v1144
  %1208 = vmatprep.subr.bf16.mxu0 %v1143
  %1209 = vmatpush2.bf16.msra.mxu0 %v1142
  %1210 = vmatprep.subr.bf16.mxu0 %v1141
  %1211 = vmatpush2.bf16.msra.mxu0 %v1140
  %1212 = vmatprep.subr.bf16.mxu0 %v1139
  %1213 = vmatpush2.bf16.msra.mxu0 %v1138
  %1214 = vmatprep.subr.bf16.mxu0 %v1137
  %1215 = vmatpush2.bf16.msra.mxu0 %v1136
  %1216 = vmatprep.mubr.bf16.mxu0 %v977
  %1217 = vmatmul.mubr.bf16.gmra.mxu0 %v976
  %v1218 = vpop.f32.mrf.mxu0
  %v1219 = vadd.f32 0.0, %v1218
  %v1220 = vpop.f32.mrf.mxu0
  %v1221 = vadd.f32 0.0, %v1220
  %v1222 = vpop.f32.mrf.mxu0
  %v1223 = vadd.f32 0.0, %v1222
  %v1224 = vpop.f32.mrf.mxu0
  %v1225 = vadd.f32 0.0, %v1224
  %1226 = vmatprep.mubr.bf16.mxu0 %v979
  %1227 = vmatmul.mubr.bf16.gmra.mxu0 %v978
  %v1228 = vpop.f32.mrf.mxu0
  %v1229 = vadd.f32 0.0, %v1228
  %v1230 = vpop.f32.mrf.mxu0
  %v1231 = vadd.f32 0.0, %v1230
  %v1232 = vpop.f32.mrf.mxu0
  %v1233 = vadd.f32 0.0, %v1232
  %v1234 = vpop.f32.mrf.mxu0
  %v1235 = vadd.f32 0.0, %v1234
  %1236 = vmatprep.mubr.bf16.mxu0 %v981
  %1237 = vmatmul.mubr.bf16.gmra.mxu0 %v980
  %v1238 = vpop.f32.mrf.mxu0
  %v1239 = vadd.f32 0.0, %v1238
  %v1240 = vpop.f32.mrf.mxu0
  %v1241 = vadd.f32 0.0, %v1240
  %v1242 = vpop.f32.mrf.mxu0
  %v1243 = vadd.f32 0.0, %v1242
  %v1244 = vpop.f32.mrf.mxu0
  %v1245 = vadd.f32 0.0, %v1244
  %1246 = vmatprep.mubr.bf16.mxu0 %v983
  %1247 = vmatmul.mubr.bf16.gmra.mxu0 %v982
  %v1248 = vpop.f32.mrf.mxu0
  %v1249 = vadd.f32 0.0, %v1248
  %v1250 = vpop.f32.mrf.mxu0
  %v1251 = vadd.f32 0.0, %v1250
  %v1252 = vpop.f32.mrf.mxu0
  %v1253 = vadd.f32 0.0, %v1252
  %v1254 = vpop.f32.mrf.mxu0
  %v1255 = vadd.f32 0.0, %v1254
  %1256 = vmatprep.mubr.bf16.mxu0 %v985
  %1257 = vmatmul.mubr.bf16.gmra.mxu0 %v984
  %v1258 = vpop.f32.mrf.mxu0
  %v1259 = vadd.f32 0.0, %v1258
  %v1260 = vpop.f32.mrf.mxu0
  %v1261 = vadd.f32 0.0, %v1260
  %v1262 = vpop.f32.mrf.mxu0
  %v1263 = vadd.f32 0.0, %v1262
  %v1264 = vpop.f32.mrf.mxu0
  %v1265 = vadd.f32 0.0, %v1264
  %1266 = vmatprep.mubr.bf16.mxu0 %v987
  %1267 = vmatmul.mubr.bf16.gmra.mxu0 %v986
  %v1268 = vpop.f32.mrf.mxu0
  %v1269 = vadd.f32 0.0, %v1268
  %v1270 = vpop.f32.mrf.mxu0
  %v1271 = vadd.f32 0.0, %v1270
  %v1272 = vpop.f32.mrf.mxu0
  %v1273 = vadd.f32 0.0, %v1272
  %v1274 = vpop.f32.mrf.mxu0
  %v1275 = vadd.f32 0.0, %v1274
  %1276 = vmatprep.mubr.bf16.mxu0 %v989
  %1277 = vmatmul.mubr.bf16.gmra.mxu0 %v988
  %v1278 = vpop.f32.mrf.mxu0
  %v1279 = vadd.f32 0.0, %v1278
  %v1280 = vpop.f32.mrf.mxu0
  %v1281 = vadd.f32 0.0, %v1280
  %v1282 = vpop.f32.mrf.mxu0
  %v1283 = vadd.f32 0.0, %v1282
  %v1284 = vpop.f32.mrf.mxu0
  %v1285 = vadd.f32 0.0, %v1284
  %1286 = vmatprep.mubr.bf16.mxu0 %v991
  %1287 = vmatmul.mubr.bf16.gmra.mxu0 %v990
  %v1288 = vpop.f32.mrf.mxu0
  %v1289 = vadd.f32 0.0, %v1288
  %v1290 = vpop.f32.mrf.mxu0
  %v1291 = vadd.f32 0.0, %v1290
  %v1292 = vpop.f32.mrf.mxu0
  %v1293 = vadd.f32 0.0, %v1292
  %v1294 = vpop.f32.mrf.mxu0
  %v1295 = vadd.f32 0.0, %v1294
  %1296 = vdwg.mxu0
  %1297 = vst [vmem:[%s3] sm:$0xff] %v1219
  %1298 = vst [vmem:[%s3 + $0x8] sm:$0xff] %v1221
  %1299 = vst [vmem:[%s3 + $0x10] sm:$0xff] %v1223
  %1300 = vst [vmem:[%s3 + $0x18] sm:$0xff] %v1225
  %1301 = vst [vmem:[%s3 + $0x20] sm:$0xff] %v1229
  %1302 = vst [vmem:[%s3 + $0x28] sm:$0xff] %v1231
  %1303 = vst [vmem:[%s3 + $0x30] sm:$0xff] %v1233
  %1304 = vst [vmem:[%s3 + $0x38] sm:$0xff] %v1235
  %1305 = vst [vmem:[%s3 + $0x40] sm:$0xff] %v1239
  %1306 = vst [vmem:[%s3 + $0x48] sm:$0xff] %v1241
  %1307 = vst [vmem:[%s3 + $0x50] sm:$0xff] %v1243
  %1308 = vst [vmem:[%s3 + $0x58] sm:$0xff] %v1245
  %1309 = vst [vmem:[%s3 + $0x60] sm:$0xff] %v1249
  %1310 = vst [vmem:[%s3 + $0x68] sm:$0xff] %v1251
  %1311 = vst [vmem:[%s3 + $0x70] sm:$0xff] %v1253
  %1312 = vst [vmem:[%s3 + $0x78] sm:$0xff] %v1255
  %1313 = vst [vmem:[%s3 + $0x80] sm:$0xff] %v1259
  %1314 = vst [vmem:[%s3 + $0x88] sm:$0xff] %v1261
  %1315 = vst [vmem:[%s3 + $0x90] sm:$0xff] %v1263
  %1316 = vst [vmem:[%s3 + $0x98] sm:$0xff] %v1265
  %1317 = vst [vmem:[%s3 + $0xa0] sm:$0xff] %v1269
  %1318 = vst [vmem:[%s3 + $0xa8] sm:$0xff] %v1271
  %1319 = vst [vmem:[%s3 + $0xb0] sm:$0xff] %v1273
  %1320 = vst [vmem:[%s3 + $0xb8] sm:$0xff] %v1275
  %1321 = vst [vmem:[%s3 + $0xc0] sm:$0xff] %v1279
  %1322 = vst [vmem:[%s3 + $0xc8] sm:$0xff] %v1281
  %1323 = vst [vmem:[%s3 + $0xd0] sm:$0xff] %v1283
  %1324 = vst [vmem:[%s3 + $0xd8] sm:$0xff] %v1285
  %1325 = vst [vmem:[%s3 + $0xe0] sm:$0xff] %v1289
  %1326 = vst [vmem:[%s3 + $0xe8] sm:$0xff] %v1291
  %1327 = vst [vmem:[%s3 + $0xf0] sm:$0xff] %v1293
  %1328 = vst [vmem:[%s3 + $0xf8] sm:$0xff] %v1295
  // Predicated region
  $region14: #{moe_forward.2} parent=0 // pred_check
    _
  $region15: #{moe_forward.2} parent=0 // pred_check_branch
    %1330 = sbr.rel (0) target = $region17
  $region16: #{moe_forward.2} parent=0 // pred_region
    _
  $region17: #{moe_forward.2} parent=0 // pred_fallthru
    _
  // Predicated region
  $region18: #{moe_forward.2} parent=0 // pred_check
    _
  $region19: #{moe_forward.2} parent=0 // pred_check_branch
    %1332 = sbr.rel (0) target = $region21
  $region20: #{moe_forward.2} parent=0 // pred_region
    _
  $region21: #{moe_forward.2} parent=0 // pred_fallthru
    _

// kernel: moe_forward.3
$region0: #{moe_forward.3}
  #allocation0 [shape = 'u32[]', space=smem, size = 0x4, offset = 0x4, fixed_abs, tag = 'smem constant byte address 0x4 - core index']
  #allocation1 [shape = 'u32[144,128]{1,0:T(1,128)}', space=vmem, size = 0x12000, scoped, tag = 'internal scratch']
  #allocation2 [shape = 's32[1]{0}', space=sflag, size = 0x4, scoped, tag = 'scoped memory for moe_forward.3']
  #allocation3 [shape = 'u8[512]{0}', space=smem, size = 0x200, scoped, tag = 'prefetched SMEM operand 0']
  #allocation4 [shape = 's32[1]{0:T(128)S(6)}', space=smem, size = 0x200, scoped, tag = 'prefetched SMEM operand 1']
  %s0 = inlined_call_operand.vmem [shape: s32[16], index: 0, kind: input, shape index: {}]
  %s1 = inlined_call_operand.<no memory space> [shape: s32[1], index: 1, kind: input, shape index: {}]
  %s2 = inlined_call_operand.vmem [shape: bf16[512,256], index: 2, kind: input, shape index: {}]
  %s3 = inlined_call_operand.vmem [shape: bf16[8,256,256], index: 3, kind: input, shape index: {}]
  %s4 = inlined_call_operand.vmem [shape: bf16[8,128,256], index: 4, kind: input, shape index: {}]
  %s5 = inlined_call_operand.vmem [shape: f32[512,256], index: 5, kind: output, shape index: {}]
  %s6 = sld [smem:[#allocation0]]
  $region53: #{moe_forward.3} parent=0
    _
  %s8 = ssub.s32 1, %s6
  %s9 = scalar_select 0, %s8, %s6
  %s10 = sshll.u32 %s0, 4
  %s11 = int_to_ptr.vmem [resolvable:$true] %s10
  %13 = dma.vmem_to_smem %s11, 16, [#allocation3], [#allocation2]
  %14 = sst [smem:[#allocation4]] %s1
  %15 = dma.done [#allocation2], 16
  %16 = sfence
  loop: start=0, step=1, limit=18
  $region2: #{moe_forward.3} parent=0 // loop_pre_header
    _
  $region3: #{moe_forward.3} parent=0 // loop_header
    %s18 = sphi 0, %s22
    %p19 = scmp.ge.s32.totalorder %s18, 18
    %s28 = sphi 0, %s30
    %s31 = sphi 0, %s28
    %s32 = sphi 0, %s31
    %s48 = sphi 0, %s32
    %s56 = sphi 0, %s58
    %s59 = sphi 0, %s56
    %s60 = sphi 0, %s59
    %s76 = sphi 0, %s60
    %s84 = sphi 0, %s86
    %s87 = sphi 0, %s84
    %s88 = sphi 0, %s87
    %s104 = sphi 0, %s88
    %s110 = sphi 0, %s112
    %s113 = sphi 0, %s110
    %s114 = sphi 0, %s113
    %s130 = sphi 0, %s114
  $region4: #{moe_forward.3} parent=0 // loop_header_branch
    %21 = sbr.rel (%p19) target = $region8
  $region5: #{moe_forward.3} parent=0 // loop_body
    %s23 = ssub.s32 %s18, 1
    %s24 = ssub.s32 %s18, 2
    %s25 = sadd.s32 %s18, 1
    %s26 = ssub.s32 %s18, %s25
    %p27 = scmp.eq.s32.totalorder %s26, 0
    %s29 = sadd.s32 %s28, 1
    %s30 = scalar_select %p27, %s28, %s29
    %p33 = pneg %p27
    %p34 = scmp.eq.s32.totalorder %s18, 15
    %p35 = por %p33, %p34
    %p36 = scmp.ne.s32.totalorder %s28, %s31
    %p37 = scmp.eq.s32.totalorder %s18, 0
    %p38 = por %p36, %p37
    %p39 = scmp.ne.s32.totalorder %s28, %s31
    %p40 = scmp.eq.s32.totalorder %s23, 15
    %p41 = por %p39, %p40
    %p42 = scmp.ne.s32.totalorder %s31, %s32
    %p43 = scmp.eq.s32.totalorder %s23, 0
    %p44 = por %p42, %p43
    %p45 = scmp.ne.s32.totalorder %s31, %s32
    %p46 = scmp.eq.s32.totalorder %s24, 15
    %p47 = por %p45, %p46
    %p49 = scmp.ne.s32.totalorder %s32, %s48
    %p50 = scmp.eq.s32.totalorder %s24, 0
    %p51 = por %p49, %p50
    %s52 = sld [smem:[#allocation3 + %s18]]
    %s53 = sld [smem:[#allocation3 + %s25]]
    %s54 = ssub.s32 %s52, %s53
    %p55 = scmp.eq.s32.totalorder %s54, 0
    %s57 = sadd.s32 %s56, 1
    %s58 = scalar_select %p55, %s56, %s57
    %p61 = pneg %p55
    %p62 = scmp.eq.s32.totalorder %s18, 15
    %p63 = por %p61, %p62
    %p64 = scmp.ne.s32.totalorder %s56, %s59
    %p65 = scmp.eq.s32.totalorder %s18, 0
    %p66 = por %p64, %p65
    %p67 = scmp.ne.s32.totalorder %s56, %s59
    %p68 = scmp.eq.s32.totalorder %s23, 15
    %p69 = por %p67, %p68
    %p70 = scmp.ne.s32.totalorder %s59, %s60
    %p71 = scmp.eq.s32.totalorder %s23, 0
    %p72 = por %p70, %p71
    %p73 = scmp.ne.s32.totalorder %s59, %s60
    %p74 = scmp.eq.s32.totalorder %s24, 15
    %p75 = por %p73, %p74
    %p77 = scmp.ne.s32.totalorder %s60, %s76
    %p78 = scmp.eq.s32.totalorder %s24, 0
    %p79 = por %p77, %p78
    %s80 = sld [smem:[#allocation3 + %s18]]
    %s81 = sld [smem:[#allocation3 + %s25]]
    %s82 = ssub.s32 %s80, %s81
    %p83 = scmp.eq.s32.totalorder %s82, 0
    %s85 = sadd.s32 %s84, 1
    %s86 = scalar_select %p83, %s84, %s85
    %p89 = pneg %p83
    %p90 = scmp.eq.s32.totalorder %s18, 15
    %p91 = por %p89, %p90
    %p92 = scmp.ne.s32.totalorder %s84, %s87
    %p93 = scmp.eq.s32.totalorder %s18, 0
    %p94 = por %p92, %p93
    %p95 = scmp.ne.s32.totalorder %s84, %s87
    %p96 = scmp.eq.s32.totalorder %s23, 15
    %p97 = por %p95, %p96
    %p98 = scmp.ne.s32.totalorder %s87, %s88
    %p99 = scmp.eq.s32.totalorder %s23, 0
    %p100 = por %p98, %p99
    %p101 = scmp.ne.s32.totalorder %s87, %s88
    %p102 = scmp.eq.s32.totalorder %s24, 15
    %p103 = por %p101, %p102
    %p105 = scmp.ne.s32.totalorder %s88, %s104
    %p106 = scmp.eq.s32.totalorder %s24, 0
    %p107 = por %p105, %p106
    %s108 = ssub.s32 %s18, %s25
    %p109 = scmp.eq.s32.totalorder %s108, 0
    %s111 = sadd.s32 %s110, 1
    %s112 = scalar_select %p109, %s110, %s111
    %p115 = pneg %p109
    %p116 = scmp.eq.s32.totalorder %s18, 15
    %p117 = por %p115, %p116
    %p118 = scmp.ne.s32.totalorder %s110, %s113
    %p119 = scmp.eq.s32.totalorder %s18, 0
    %p120 = por %p118, %p119
    %p121 = scmp.ne.s32.totalorder %s110, %s113
    %p122 = scmp.eq.s32.totalorder %s23, 15
    %p123 = por %p121, %p122
    %p124 = scmp.ne.s32.totalorder %s113, %s114
    %p125 = scmp.eq.s32.totalorder %s23, 0
    %p126 = por %p124, %p125
    %p127 = scmp.ne.s32.totalorder %s113, %s114
    %p128 = scmp.eq.s32.totalorder %s24, 15
    %p129 = por %p127, %p128
    %p131 = scmp.ne.s32.totalorder %s114, %s130
    %p132 = scmp.eq.s32.totalorder %s24, 0
    %p133 = por %p131, %p132
    %p134 = scmp.le.s32.totalorder 1, %s18
    %p135 = scmp.lt.s32.totalorder %s18, 17
    %p136 = pnand %p134, %p135
    %p137 = pneg %p136
    // Predicated region
    $region9: #{moe_forward.3} parent=5 // pred_check
      _
    $region10: #{moe_forward.3} parent=5 // pred_check_branch
      %139 = sbr.rel (%p136) target = $region12
    $region11: #{moe_forward.3} parent=5 // pred_region
      %s140 = ssub.s32 %s18, 1
    $region12: #{moe_forward.3} parent=5 // pred_fallthru
      _
    %p141 = scmp.lt.s32.totalorder %s18, 16
    // Predicated region
    $region13: #{moe_forward.3} parent=5 // pred_check
      %p142 = pneg %p141
    $region14: #{moe_forward.3} parent=5 // pred_check_branch
      %144 = sbr.rel (%p142) target = $region16
    $region15: #{moe_forward.3} parent=5 // pred_region
      // Predicated region
      $region17: #{moe_forward.3} parent=15 // pred_check
        %p145 = pneg %p38
      $region18: #{moe_forward.3} parent=15 // pred_check_branch
        %147 = sbr.rel (%p145) target = $region20
      $region19: #{moe_forward.3} parent=15 // pred_region
        %s148 = smul.u32 4, %s18
        %p149 = scmp.lt.s32.totalorder %s148, 63
        %s150 = scalar_select %p149, %s148, 63
        %s151 = smul.addr %s150, 2
        %s152 = smul.addr %s151, 4
        %s153 = scalar_lea.vmem %s2, %s152
        %s154 = smul.u32 4, %s18
      $region20: #{moe_forward.3} parent=15 // pred_fallthru
        _
      // Predicated region
      $region21: #{moe_forward.3} parent=15 // pred_check
        %p155 = pneg %p66
      $region22: #{moe_forward.3} parent=15 // pred_check_branch
        %157 = sbr.rel (%p155) target = $region24
      $region23: #{moe_forward.3} parent=15 // pred_region
        %s158 = sld [smem:[#allocation3 + %s18]]
        %p159 = scmp.lt.s32.totalorder %s158, 7
        %s160 = scalar_select %p159, %s158, 7
        %s161 = smul.addr %s160, 64
        %s162 = smul.addr %s161, 4
        %s163 = scalar_lea.vmem %s3, %s162
        %s164 = sld [smem:[#allocation3 + %s18]]
      $region24: #{moe_forward.3} parent=15 // pred_fallthru
        _
      // Predicated region
      $region25: #{moe_forward.3} parent=15 // pred_check
        %p165 = pneg %p94
      $region26: #{moe_forward.3} parent=15 // pred_check_branch
        %167 = sbr.rel (%p165) target = $region28
      $region27: #{moe_forward.3} parent=15 // pred_region
        %s168 = sld [smem:[#allocation3 + %s18]]
        %p169 = scmp.lt.s32.totalorder %s168, 7
        %s170 = scalar_select %p169, %s168, 7
        %s171 = smul.addr %s170, 32
        %s172 = smul.addr %s171, 4
        %s173 = scalar_lea.vmem %s4, %s172
        %s174 = sld [smem:[#allocation3 + %s18]]
      $region28: #{moe_forward.3} parent=15 // pred_fallthru
        _
    $region16: #{moe_forward.3} parent=5 // pred_fallthru
      _
    %p175 = scmp.le.s32.totalorder 1, %s18
    %p176 = scmp.lt.s32.totalorder %s18, 17
    %p177 = pnand %p175, %p176
    %p178 = pneg %p177
    // Predicated region
    $region29: #{moe_forward.3} parent=5 // pred_check
      _
    $region30: #{moe_forward.3} parent=5 // pred_check_branch
      %180 = sbr.rel (%p177) target = $region32
    $region31: #{moe_forward.3} parent=5 // pred_region
      %s181 = ssub.s32 %s18, 1
      %s182 = smul.u32 4, %s23
      %p183 = scmp.lt.s32.totalorder %s182, 63
      %s184 = scalar_select %p183, %s182, 63
      %s185 = smul.addr %s184, 2
      %s186 = smul.addr %s185, 4
      %s187 = scalar_lea.vmem %s2, %s186
      %p188 = pneg %p44
      %p189 = pneg %p41
      %s190 = sld [smem:[#allocation3 + %s23]]
      %p191 = scmp.lt.s32.totalorder %s190, 7
      %s192 = scalar_select %p191, %s190, 7
      %s193 = smul.addr %s192, 64
      %s194 = smul.addr %s193, 4
      %s195 = scalar_lea.vmem %s3, %s194
      %p196 = pneg %p72
      %p197 = pneg %p69
      %s198 = sld [smem:[#allocation3 + %s23]]
      %p199 = scmp.lt.s32.totalorder %s198, 7
      %s200 = scalar_select %p199, %s198, 7
      %s201 = smul.addr %s200, 32
      %s202 = smul.addr %s201, 4
      %s203 = scalar_lea.vmem %s4, %s202
      %p204 = pneg %p100
      %p205 = pneg %p97
      %p206 = pneg %p126
      %p207 = pneg %p123
      %s208 = smul.u32 4, %s23
      %p209 = scmp.lt.s32.totalorder %s208, 63
      %s210 = scalar_select %p209, %s208, 63
      %s211 = smul.addr %s210, 2
      %s212 = smul.addr %s211, 8
      %s213 = scalar_lea.vmem %s5, %s212
      %s214 = smul.u32 4, %s23
      %p215 = scmp.lt.s32.totalorder %s214, 63
      %s216 = scalar_select %p215, %s214, 63
      %s217 = smul.addr %s216, 2
      %s218 = smul.addr %s217, 4
      %s219 = scalar_lea.vmem %s2, %s218
      %s220 = smul.u32 4, %s23
      %s221 = sld [smem:[#allocation3 + %s23]]
      %p222 = scmp.lt.s32.totalorder %s221, 7
      %s223 = scalar_select %p222, %s221, 7
      %s224 = smul.addr %s223, 64
      %s225 = smul.addr %s224, 4
      %s226 = scalar_lea.vmem %s3, %s225
      %s227 = sld [smem:[#allocation3 + %s23]]
      %s228 = sld [smem:[#allocation3 + %s23]]
      %p229 = scmp.lt.s32.totalorder %s228, 7
      %s230 = scalar_select %p229, %s228, 7
      %s231 = smul.addr %s230, 32
      %s232 = smul.addr %s231, 4
      %s233 = scalar_lea.vmem %s4, %s232
      %s234 = sld [smem:[#allocation3 + %s23]]
      %s235 = smul.u32 4, %s23
      %p236 = scmp.lt.s32.totalorder %s235, 63
      %s237 = scalar_select %p236, %s235, 63
      %s238 = smul.addr %s237, 2
      %s239 = smul.addr %s238, 8
      %s240 = scalar_lea.vmem %s5, %s239
      %s241 = smul.u32 4, %s23
      %s243 = sld [smem:[#allocation4]]
      %p244 = scmp.lt.s32.totalorder %s23, %s243
      // Predicated region
      $region33: #{moe_forward.3} parent=31 // pred_check
        %p245 = pneg %p244
      $region34: #{moe_forward.3} parent=31 // pred_check_branch
        %247 = sbr.rel (%p245) target = $region36
      $region35: #{moe_forward.3} parent=31 // pred_region
        %v248 = vld [vmem:[%s219] sm:$0xff]
        %v249 = vld [vmem:[%s219 + $0x8] sm:$0xff]
        %v250 = vld [vmem:[%s219 + $0x10] sm:$0xff]
        %v251 = vld [vmem:[%s219 + $0x18] sm:$0xff]
        %v252 = vld [vmem:[%s226] sm:$0xff]
        %v253 = vld [vmem:[%s226 + $0x8] sm:$0xff]
        %v254 = vld [vmem:[%s226 + $0x10] sm:$0xff]
        %v255 = vld [vmem:[%s226 + $0x18] sm:$0xff]
        %v256 = vld [vmem:[%s226 + $0x20] sm:$0xff]
        %v257 = vld [vmem:[%s226 + $0x28] sm:$0xff]
        %v258 = vld [vmem:[%s226 + $0x30] sm:$0xff]
        %v259 = vld [vmem:[%s226 + $0x38] sm:$0xff]
        %v260 = vld [vmem:[%s226 + $0x40] sm:$0xff]
        %v261 = vld [vmem:[%s226 + $0x48] sm:$0xff]
        %v262 = vld [vmem:[%s226 + $0x50] sm:$0xff]
        %v263 = vld [vmem:[%s226 + $0x58] sm:$0xff]
        %v264 = vld [vmem:[%s226 + $0x60] sm:$0xff]
        %v265 = vld [vmem:[%s226 + $0x68] sm:$0xff]
        %v266 = vld [vmem:[%s226 + $0x70] sm:$0xff]
        %v267 = vld [vmem:[%s226 + $0x78] sm:$0xff]
        %v268 = vld [vmem:[%s226 + $0x80] sm:$0xff]
        %v269 = vld [vmem:[%s226 + $0x88] sm:$0xff]
        %v270 = vld [vmem:[%s226 + $0x90] sm:$0xff]
        %v271 = vld [vmem:[%s226 + $0x98] sm:$0xff]
        %v272 = vld [vmem:[%s226 + $0xa0] sm:$0xff]
        %v273 = vld [vmem:[%s226 + $0xa8] sm:$0xff]
        %v274 = vld [vmem:[%s226 + $0xb0] sm:$0xff]
        %v275 = vld [vmem:[%s226 + $0xb8] sm:$0xff]
        %v276 = vld [vmem:[%s226 + $0xc0] sm:$0xff]
        %v277 = vld [vmem:[%s226 + $0xc8] sm:$0xff]
        %v278 = vld [vmem:[%s226 + $0xd0] sm:$0xff]
        %v279 = vld [vmem:[%s226 + $0xd8] sm:$0xff]
        %v280 = vld [vmem:[%s226 + $0xe0] sm:$0xff]
        %v281 = vld [vmem:[%s226 + $0xe8] sm:$0xff]
        %v282 = vld [vmem:[%s226 + $0xf0] sm:$0xff]
        %v283 = vld [vmem:[%s226 + $0xf8] sm:$0xff]
        %v288 = vunpack.c.l.b16 %v248
        %v289 = vunpack.c.h.b16 %v248
        %v290 = vunpack.c.l.b16 %v249
        %v291 = vunpack.c.h.b16 %v249
        %v292 = vunpack.c.l.b16 %v250
        %v293 = vunpack.c.h.b16 %v250
        %v294 = vunpack.c.l.b16 %v251
        %v295 = vunpack.c.h.b16 %v251
        %v296 = vpack.c.b16 %v290, %v288
        %v297 = vpack.c.b16 %v291, %v289
        %v298 = vpack.c.b16 %v294, %v292
        %v299 = vpack.c.b16 %v295, %v293
        %v336 = vunpack.c.l.b16 %v252
        %v337 = vunpack.c.h.b16 %v252
        %v338 = vunpack.c.l.b16 %v253
        %v339 = vunpack.c.h.b16 %v253
        %v340 = vunpack.c.l.b16 %v254
        %v341 = vunpack.c.h.b16 %v254
        %v342 = vunpack.c.l.b16 %v255
        %v343 = vunpack.c.h.b16 %v255
        %v344 = vunpack.c.l.b16 %v256
        %v345 = vunpack.c.h.b16 %v256
        %v346 = vunpack.c.l.b16 %v257
        %v347 = vunpack.c.h.b16 %v257
        %v348 = vunpack.c.l.b16 %v258
        %v349 = vunpack.c.h.b16 %v258
        %v350 = vunpack.c.l.b16 %v259
        %v351 = vunpack.c.h.b16 %v259
        %v352 = vunpack.c.l.b16 %v260
        %v353 = vunpack.c.h.b16 %v260
        %v354 = vunpack.c.l.b16 %v261
        %v355 = vunpack.c.h.b16 %v261
        %v356 = vunpack.c.l.b16 %v262
        %v357 = vunpack.c.h.b16 %v262
        %v358 = vunpack.c.l.b16 %v263
        %v359 = vunpack.c.h.b16 %v263
        %v360 = vunpack.c.l.b16 %v264
        %v361 = vunpack.c.h.b16 %v264
        %v362 = vunpack.c.l.b16 %v265
        %v363 = vunpack.c.h.b16 %v265
        %v364 = vunpack.c.l.b16 %v266
        %v365 = vunpack.c.h.b16 %v266
        %v366 = vunpack.c.l.b16 %v267
        %v367 = vunpack.c.h.b16 %v267
        %v368 = vunpack.c.l.b16 %v268
        %v369 = vunpack.c.h.b16 %v268
        %v370 = vunpack.c.l.b16 %v269
        %v371 = vunpack.c.h.b16 %v269
        %v372 = vunpack.c.l.b16 %v270
        %v373 = vunpack.c.h.b16 %v270
        %v374 = vunpack.c.l.b16 %v271
        %v375 = vunpack.c.h.b16 %v271
        %v376 = vunpack.c.l.b16 %v272
        %v377 = vunpack.c.h.b16 %v272
        %v378 = vunpack.c.l.b16 %v273
        %v379 = vunpack.c.h.b16 %v273
        %v380 = vunpack.c.l.b16 %v274
        %v381 = vunpack.c.h.b16 %v274
        %v382 = vunpack.c.l.b16 %v275
        %v383 = vunpack.c.h.b16 %v275
        %v384 = vunpack.c.l.b16 %v276
        %v385 = vunpack.c.h.b16 %v276
        %v386 = vunpack.c.l.b16 %v277
        %v387 = vunpack.c.h.b16 %v277
        %v388 = vunpack.c.l.b16 %v278
        %v389 = vunpack.c.h.b16 %v278
        %v390 = vunpack.c.l.b16 %v279
        %v391 = vunpack.c.h.b16 %v279
        %v392 = vunpack.c.l.b16 %v280
        %v393 = vunpack.c.h.b16 %v280
        %v394 = vunpack.c.l.b16 %v281
        %v395 = vunpack.c.h.b16 %v281
        %v396 = vunpack.c.l.b16 %v282
        %v397 = vunpack.c.h.b16 %v282
        %v398 = vunpack.c.l.b16 %v283
        %v399 = vunpack.c.h.b16 %v283
        %v400 = vpack.c.b16 %v338, %v336
        %v401 = vpack.c.b16 %v339, %v337
        %v402 = vpack.c.b16 %v342, %v340
        %v403 = vpack.c.b16 %v343, %v341
        %v404 = vpack.c.b16 %v346, %v344
        %v405 = vpack.c.b16 %v347, %v345
        %v406 = vpack.c.b16 %v350, %v348
        %v407 = vpack.c.b16 %v351, %v349
        %v408 = vpack.c.b16 %v354, %v352
        %v409 = vpack.c.b16 %v355, %v353
        %v410 = vpack.c.b16 %v358, %v356
        %v411 = vpack.c.b16 %v359, %v357
        %v412 = vpack.c.b16 %v362, %v360
        %v413 = vpack.c.b16 %v363, %v361
        %v414 = vpack.c.b16 %v366, %v364
        %v415 = vpack.c.b16 %v367, %v365
        %v416 = vpack.c.b16 %v370, %v368
        %v417 = vpack.c.b16 %v371, %v369
        %v418 = vpack.c.b16 %v374, %v372
        %v419 = vpack.c.b16 %v375, %v373
        %v420 = vpack.c.b16 %v378, %v376
        %v421 = vpack.c.b16 %v379, %v377
        %v422 = vpack.c.b16 %v382, %v380
        %v423 = vpack.c.b16 %v383, %v381
        %v424 = vpack.c.b16 %v386, %v384
        %v425 = vpack.c.b16 %v387, %v385
        %v426 = vpack.c.b16 %v390, %v388
        %v427 = vpack.c.b16 %v391, %v389
        %v428 = vpack.c.b16 %v394, %v392
        %v429 = vpack.c.b16 %v395, %v393
        %v430 = vpack.c.b16 %v398, %v396
        %v431 = vpack.c.b16 %v399, %v397
        %464 = vmatprep.subr.bf16.mxu0 %v415
        %465 = vmatpush1.bf16.msra.mxu0 %v414
        %466 = vmatprep.subr.bf16.mxu0 %v413
        %467 = vmatpush1.bf16.msra.mxu0 %v412
        %468 = vmatprep.subr.bf16.mxu0 %v411
        %469 = vmatpush1.bf16.msra.mxu0 %v410
        %470 = vmatprep.subr.bf16.mxu0 %v409
        %471 = vmatpush1.bf16.msra.mxu0 %v408
        %472 = vmatprep.subr.bf16.mxu0 %v407
        %473 = vmatpush1.bf16.msra.mxu0 %v406
        %474 = vmatprep.subr.bf16.mxu0 %v405
        %475 = vmatpush1.bf16.msra.mxu0 %v404
        %476 = vmatprep.subr.bf16.mxu0 %v403
        %477 = vmatpush1.bf16.msra.mxu0 %v402
        %478 = vmatprep.subr.bf16.mxu0 %v401
        %479 = vmatpush1.bf16.msra.mxu0 %v400
        %480 = vmatprep.subr.bf16.mxu0 %v431
        %481 = vmatpush2.bf16.msra.mxu0 %v430
        %482 = vmatprep.subr.bf16.mxu0 %v429
        %483 = vmatpush2.bf16.msra.mxu0 %v428
        %484 = vmatprep.subr.bf16.mxu0 %v427
        %485 = vmatpush2.bf16.msra.mxu0 %v426
        %486 = vmatprep.subr.bf16.mxu0 %v425
        %487 = vmatpush2.bf16.msra.mxu0 %v424
        %488 = vmatprep.subr.bf16.mxu0 %v423
        %489 = vmatpush2.bf16.msra.mxu0 %v422
        %490 = vmatprep.subr.bf16.mxu0 %v421
        %491 = vmatpush2.bf16.msra.mxu0 %v420
        %492 = vmatprep.subr.bf16.mxu0 %v419
        %493 = vmatpush2.bf16.msra.mxu0 %v418
        %494 = vmatprep.subr.bf16.mxu0 %v417
        %495 = vmatpush2.bf16.msra.mxu0 %v416
        %496 = vmatprep.mubr.bf16.mxu0 %v297
        %497 = vmatmul.mubr.bf16.gmra.mxu0 %v296
        %v498 = vpop.f32.mrf.mxu0
        %v499 = vadd.f32 0.0, %v498
        %v500 = vpop.f32.mrf.mxu0
        %v501 = vadd.f32 0.0, %v500
        %v502 = vpop.f32.mrf.mxu0
        %v503 = vadd.f32 0.0, %v502
        %v504 = vpop.f32.mrf.mxu0
        %v505 = vadd.f32 0.0, %v504
        %506 = vmatprep.mubr.bf16.mxu0 %v299
        %507 = vmatmul.mubr.bf16.gmra.mxu0 %v298
        %v508 = vpop.f32.mrf.mxu0
        %v509 = vadd.f32 0.0, %v508
        %v510 = vpop.f32.mrf.mxu0
        %v511 = vadd.f32 0.0, %v510
        %v512 = vpop.f32.mrf.mxu0
        %v513 = vadd.f32 0.0, %v512
        %v514 = vpop.f32.mrf.mxu0
        %v515 = vadd.f32 0.0, %v514
        %516 = vdwg.mxu0
        %v517 = vsub.f32 0.0, %v499
        %v518 = vsub.f32 0.0, %v503
        %v519 = vsub.f32 0.0, %v509
        %v520 = vsub.f32 0.0, %v513
        %v521 = vmul.f32 %v517, 1.442695
        %v522 = vpow.pop %v521
        %v523 = vmul.f32 %v518, 1.442695
        %v524 = vpow.pop %v523
        %v525 = vmul.f32 %v519, 1.442695
        %v526 = vpow.pop %v525
        %v527 = vmul.f32 %v520, 1.442695
        %v528 = vpow.pop %v527
        %v529 = vadd.f32 %v522, 1.0
        %v530 = vadd.f32 %v524, 1.0
        %v531 = vadd.f32 %v526, 1.0
        %v532 = vadd.f32 %v528, 1.0
        %v533 = vrcp.pop %v529
        %v534 = vmul.f32 1.0, %v533
        %v535 = vrcp.pop %v530
        %v536 = vmul.f32 1.0, %v535
        %v537 = vrcp.pop %v531
        %v538 = vmul.f32 1.0, %v537
        %v539 = vrcp.pop %v532
        %v540 = vmul.f32 1.0, %v539
        %v541 = vmul.f32 %v499, %v534
        %v542 = vmul.f32 %v503, %v536
        %v543 = vmul.f32 %v509, %v538
        %v544 = vmul.f32 %v513, %v540
        %v545 = vmul.f32 %v541, %v501
        %v546 = vmul.f32 %v542, %v505
        %v547 = vmul.f32 %v543, %v511
        %v548 = vmul.f32 %v544, %v515
        %v549 = vpack.c.bf16 %v546, %v545
        %v550 = vpack.c.bf16 %v548, %v547
        %v551 = vld [vmem:[%s233] sm:$0xff]
        %v552 = vld [vmem:[%s233 + $0x8] sm:$0xff]
        %v553 = vld [vmem:[%s233 + $0x10] sm:$0xff]
        %v554 = vld [vmem:[%s233 + $0x18] sm:$0xff]
        %v555 = vld [vmem:[%s233 + $0x20] sm:$0xff]
        %v556 = vld [vmem:[%s233 + $0x28] sm:$0xff]
        %v557 = vld [vmem:[%s233 + $0x30] sm:$0xff]
        %v558 = vld [vmem:[%s233 + $0x38] sm:$0xff]
        %v559 = vld [vmem:[%s233 + $0x40] sm:$0xff]
        %v560 = vld [vmem:[%s233 + $0x48] sm:$0xff]
        %v561 = vld [vmem:[%s233 + $0x50] sm:$0xff]
        %v562 = vld [vmem:[%s233 + $0x58] sm:$0xff]
        %v563 = vld [vmem:[%s233 + $0x60] sm:$0xff]
        %v564 = vld [vmem:[%s233 + $0x68] sm:$0xff]
        %v565 = vld [vmem:[%s233 + $0x70] sm:$0xff]
        %v566 = vld [vmem:[%s233 + $0x78] sm:$0xff]
        %v583 = vunpack.c.l.b16 %v551
        %v584 = vunpack.c.h.b16 %v551
        %v585 = vunpack.c.l.b16 %v552
        %v586 = vunpack.c.h.b16 %v552
        %v587 = vunpack.c.l.b16 %v553
        %v588 = vunpack.c.h.b16 %v553
        %v589 = vunpack.c.l.b16 %v554
        %v590 = vunpack.c.h.b16 %v554
        %v591 = vunpack.c.l.b16 %v555
        %v592 = vunpack.c.h.b16 %v555
        %v593 = vunpack.c.l.b16 %v556
        %v594 = vunpack.c.h.b16 %v556
        %v595 = vunpack.c.l.b16 %v557
        %v596 = vunpack.c.h.b16 %v557
        %v597 = vunpack.c.l.b16 %v558
        %v598 = vunpack.c.h.b16 %v558
        %v599 = vunpack.c.l.b16 %v559
        %v600 = vunpack.c.h.b16 %v559
        %v601 = vunpack.c.l.b16 %v560
        %v602 = vunpack.c.h.b16 %v560
        %v603 = vunpack.c.l.b16 %v561
        %v604 = vunpack.c.h.b16 %v561
        %v605 = vunpack.c.l.b16 %v562
        %v606 = vunpack.c.h.b16 %v562
        %v607 = vunpack.c.l.b16 %v563
        %v608 = vunpack.c.h.b16 %v563
        %v609 = vunpack.c.l.b16 %v564
        %v610 = vunpack.c.h.b16 %v564
        %v611 = vunpack.c.l.b16 %v565
        %v612 = vunpack.c.h.b16 %v565
        %v613 = vunpack.c.l.b16 %v566
        %v614 = vunpack.c.h.b16 %v566
        %v615 = vpack.c.b16 %v585, %v583
        %v616 = vpack.c.b16 %v586, %v584
        %v617 = vpack.c.b16 %v589, %v587
        %v618 = vpack.c.b16 %v590, %v588
        %v619 = vpack.c.b16 %v593, %v591
        %v620 = vpack.c.b16 %v594, %v592
        %v621 = vpack.c.b16 %v597, %v595
        %v622 = vpack.c.b16 %v598, %v596
        %v623 = vpack.c.b16 %v601, %v599
        %v624 = vpack.c.b16 %v602, %v600
        %v625 = vpack.c.b16 %v605, %v603
        %v626 = vpack.c.b16 %v606, %v604
        %v627 = vpack.c.b16 %v609, %v607
        %v628 = vpack.c.b16 %v610, %v608
        %v629 = vpack.c.b16 %v613, %v611
        %v630 = vpack.c.b16 %v614, %v612
        %647 = vmatprep.subr.bf16.mxu0 %v630
        %648 = vmatpush1.bf16.msra.mxu0 %v629
        %649 = vmatprep.subr.bf16.mxu0 %v628
        %650 = vmatpush1.bf16.msra.mxu0 %v627
        %651 = vmatprep.subr.bf16.mxu0 %v626
        %652 = vmatpush1.bf16.msra.mxu0 %v625
        %653 = vmatprep.subr.bf16.mxu0 %v624
        %654 = vmatpush1.bf16.msra.mxu0 %v623
        %655 = vmatprep.subr.bf16.mxu0 %v622
        %656 = vmatpush1.bf16.msra.mxu0 %v621
        %657 = vmatprep.subr.bf16.mxu0 %v620
        %658 = vmatpush1.bf16.msra.mxu0 %v619
        %659 = vmatprep.subr.bf16.mxu0 %v618
        %660 = vmatpush1.bf16.msra.mxu0 %v617
        %661 = vmatprep.subr.bf16.mxu0 %v616
        %662 = vmatpush1.bf16.msra.mxu0 %v615
        %663 = vmatprep.subr.bf16.mxu0 0
        %664 = vmatpush2.bf16.msra.mxu0 0
        %665 = vmatprep.subr.bf16.mxu0 0
        %666 = vmatpush2.bf16.msra.mxu0 0
        %667 = vmatprep.subr.bf16.mxu0 0
        %668 = vmatpush2.bf16.msra.mxu0 0
        %669 = vmatprep.subr.bf16.mxu0 0
        %670 = vmatpush2.bf16.msra.mxu0 0
        %671 = vmatprep.subr.bf16.mxu0 0
        %672 = vmatpush2.bf16.msra.mxu0 0
        %673 = vmatprep.subr.bf16.mxu0 0
        %674 = vmatpush2.bf16.msra.mxu0 0
        %675 = vmatprep.subr.bf16.mxu0 0
        %676 = vmatpush2.bf16.msra.mxu0 0
        %677 = vmatprep.subr.bf16.mxu0 0
        %678 = vmatpush2.bf16.msra.mxu0 0
        %679 = vmatprep.mubr.bf16.mxu0 0
        %680 = vmatmul.mubr.bf16.gmra.mxu0 %v549
        %v681 = vpop.f32.mrf.mxu0
        %v682 = vadd.f32 0.0, %v681
        %v683 = vpop.f32.mrf.mxu0
        %v684 = vadd.f32 0.0, %v683
        %v685 = vpop.f32.mrf.mxu0
        %v686 = vadd.f32 0.0, %v685
        %v687 = vpop.f32.mrf.mxu0
        %v688 = vadd.f32 0.0, %v687
        %689 = vmatprep.mubr.bf16.mxu0 0
        %690 = vmatmul.mubr.bf16.gmra.mxu0 %v550
        %v691 = vpop.f32.mrf.mxu0
        %v692 = vadd.f32 0.0, %v691
        %v693 = vpop.f32.mrf.mxu0
        %v694 = vadd.f32 0.0, %v693
        %v695 = vpop.f32.mrf.mxu0
        %v696 = vadd.f32 0.0, %v695
        %v697 = vpop.f32.mrf.mxu0
        %v698 = vadd.f32 0.0, %v697
        %699 = vdwg.mxu0
        %700 = vst [vmem:[%s240] sm:$0xff] %v682
        %701 = vst [vmem:[%s240 + $0x8] sm:$0xff] %v684
        %702 = vst [vmem:[%s240 + $0x10] sm:$0xff] %v686
        %703 = vst [vmem:[%s240 + $0x18] sm:$0xff] %v688
        %704 = vst [vmem:[%s240 + $0x20] sm:$0xff] %v692
        %705 = vst [vmem:[%s240 + $0x28] sm:$0xff] %v694
        %706 = vst [vmem:[%s240 + $0x30] sm:$0xff] %v696
        %707 = vst [vmem:[%s240 + $0x38] sm:$0xff] %v698
      $region36: #{moe_forward.3} parent=31 // pred_fallthru
        _
      %s708 = sld [smem:[#allocation4]]
      %p709 = scmp.ge.s32.totalorder %s23, %s708
      // Predicated region
      $region37: #{moe_forward.3} parent=31 // pred_check
        %p710 = pneg %p709
      $region38: #{moe_forward.3} parent=31 // pred_check_branch
        %712 = sbr.rel (%p710) target = $region40
      $region39: #{moe_forward.3} parent=31 // pred_region
        %713 = vst [vmem:[%s240] sm:$0xff] 0.0
        %714 = vst [vmem:[%s240 + $0x8] sm:$0xff] 0.0
        %715 = vst [vmem:[%s240 + $0x10] sm:$0xff] 0.0
        %716 = vst [vmem:[%s240 + $0x18] sm:$0xff] 0.0
        %717 = vst [vmem:[%s240 + $0x20] sm:$0xff] 0.0
        %718 = vst [vmem:[%s240 + $0x28] sm:$0xff] 0.0
        %719 = vst [vmem:[%s240 + $0x30] sm:$0xff] 0.0
        %720 = vst [vmem:[%s240 + $0x38] sm:$0xff] 0.0
      $region40: #{moe_forward.3} parent=31 // pred_fallthru
        _
      %s721 = smul.u32 4, %s23
      %p722 = scmp.lt.s32.totalorder %s721, 63
      %s723 = scalar_select %p722, %s721, 63
      %s724 = smul.addr %s723, 2
      %s725 = smul.addr %s724, 8
      %s726 = scalar_lea.vmem %s5, %s725
      // Predicated region
      $region41: #{moe_forward.3} parent=31 // pred_check
        %p727 = pneg %p123
      $region42: #{moe_forward.3} parent=31 // pred_check_branch
        %729 = sbr.rel (%p727) target = $region44
      $region43: #{moe_forward.3} parent=31 // pred_region
        %s730 = smul.u32 4, %s23
      $region44: #{moe_forward.3} parent=31 // pred_fallthru
        _
    $region32: #{moe_forward.3} parent=5 // pred_fallthru
      _
    %p731 = scmp.le.s32.totalorder 2, %s18
    // Predicated region
    $region45: #{moe_forward.3} parent=5 // pred_check
      %p732 = pneg %p731
    $region46: #{moe_forward.3} parent=5 // pred_check_branch
      %734 = sbr.rel (%p732) target = $region48
    $region47: #{moe_forward.3} parent=5 // pred_region
      %s735 = ssub.s32 %s18, 2
      // Predicated region
      $region49: #{moe_forward.3} parent=47 // pred_check
        %p736 = pneg %p129
      $region50: #{moe_forward.3} parent=47 // pred_check_branch
        %738 = sbr.rel (%p736) target = $region52
      $region51: #{moe_forward.3} parent=47 // pred_region
        %s739 = smul.u32 4, %s24
        %p740 = scmp.lt.s32.totalorder %s739, 63
        %s741 = scalar_select %p740, %s739, 63
        %s742 = smul.addr %s741, 2
        %s743 = smul.addr %s742, 8
        %s744 = scalar_lea.vmem %s5, %s743
      $region52: #{moe_forward.3} parent=47 // pred_fallthru
        _
    $region48: #{moe_forward.3} parent=5 // pred_fallthru
      _
  $region6: #{moe_forward.3} parent=0 // loop_footer
    %s22 = sadd.s32 1, %s18
  $region7: #{moe_forward.3} parent=0 // loop_footer_branch
    %17 = sbr.rel target = $region3
  $region8: #{moe_forward.3} parent=0 // loop_exit
    _

</llo_original>
